<compile_context>
chip_gen: v7x
topology: tpu7x:2x2x1
jax: 0.10.0
libtpu: 0.0.40
codegen_flags: <defaults>
</compile_context>

<pallas_src>
import functools

import jax
import jax.numpy as jnp
from jax import lax
from jax.experimental import pallas as pl
from jax.experimental.pallas import tpu as pltpu


def _decoder_kernel(x_ref, w_ref, b_ref, o_ref, *, stride, group, n_groups):
    """One batch block per grid step.

    x_ref: (nb, n_groups, G*C)   VMEM  (rows ordered c*G + j within a group)
    w_ref: (G*C, W_g)            VMEM  block-Toeplitz weight, W_g=(G-1)*stride+K
    b_ref: (1,)                  SMEM  scalar bias (out_channels == 1)
    o_ref: (nb, 1, L_out)        VMEM  lane-dense output rows
    """
    nb = x_ref.shape[0]
    gc = x_ref.shape[2]
    w_g = w_ref.shape[1]
    l_out = o_ref.shape[2]

    # Single MXU matmul per group: projection + intra-group overlap-add fused.
    x2 = x_ref[...].reshape(nb * n_groups, gc)
    p = lax.dot_general(
        x2, w_ref[...],
        dimension_numbers=(((1,), (0,)), ((), ())),
        preferred_element_type=jnp.float32,
    )                                               # (nb*n_groups, W_g)

    if n_groups == 1:
        out = p.reshape(nb, w_g)                    # W_g == L_out
    else:
        gs = group * stride                         # body width per group
        tail_w = w_g - gs                           # = kernel_size - stride
        p = p.reshape(nb, n_groups, w_g)
        if tail_w > 0:
            body = p[:, :, :gs]                     # (nb, n_groups, gs)
            tail = p[:, :, gs:]                     # (nb, n_groups, tail_w)
            # group g's tail overlaps the first tail_w cols of group g+1's body
            prev = lax.pad(tail[:, :-1, :], jnp.float32(0.0),
                           ((0, 0, 0), (1, 0, 0), (0, gs - tail_w, 0)))
            body = (body + prev).reshape(nb, n_groups * gs)
            out = jnp.concatenate([body, tail[:, -1, :]], axis=1)
        else:                                       # kernel_size == stride
            out = p.reshape(nb, n_groups * w_g)

    o_ref[...] = (out + b_ref[0]).reshape(nb, 1, l_out).astype(o_ref.dtype)


def _tensorcores_per_device():
    """Best-effort TensorCore-per-chip count (2 on v7x/v5p/v4, else 1)."""
    try:
        d = jax.devices()[0]
        nc = getattr(d, "num_cores", None)
        if nc:
            return int(nc)
        kind = str(getattr(d, "device_kind", "")).lower()
        if any(tag in kind for tag in ("v7", "v5p", "v4")):
            return 2
    except Exception:
        pass
    return 1


def _pick_batch_block(n, per_elem_bytes, num_cores):
    """Largest balanced batch block that fits a VMEM budget.

    Single-TC chips: one grid step (per-step overhead dominates small shapes).
    Dual-TC chips: two balanced grid steps so the 'parallel' batch axis can
    shard across TensorCores.
    """
    budget = 40 << 20                                   # double-buffered x budget
    cap = max(1, budget // max(1, 2 * per_elem_bytes))
    steps = 2 if (num_cores >= 2 and n >= 2) else 1
    nb = max(1, min(n, cap, -(-n // steps)))
    while n % nb:
        nb -= 1
    return nb


def decoder_forward(x_ncl, weight, bias, *, kernel_size, stride, group=None):
    """ConvTranspose1d(C_in, 1, kernel_size, stride) forward (padding=0).

    x_ncl:  (N, C_in, T) float32   (PyTorch NCL layout)
    weight: (C_in, 1, K) float32   (PyTorch ConvTranspose1d weight layout)
    bias:   (1,)         float32
    returns (N, 1, L_out) with L_out = (T - 1) * stride + kernel_size
    """
    N, C, T = x_ncl.shape
    K = kernel_size
    L_out = (T - 1) * stride + K

    # ---- choose group size G for the block-Toeplitz matmul ------------------
    if group is None:
        single_group_w_bytes = C * T * L_out * 4
        if single_group_w_bytes <= (8 << 20):
            group = T                                   # whole utterance, 1 matmul
        else:
            group = max(1, min(T, pl.cdiv(128, stride)))  # lane-dense G*stride
            while T % group:
                group -= 1
    assert T % group == 0
    n_groups = T // group
    if n_groups > 1:
        assert stride <= K <= (group + 1) * stride, (
            "multi-group path requires stride <= kernel_size <= (G+1)*stride")
    W_g = (group - 1) * stride + K

    # ---- block-Toeplitz weight (rows ordered c*G + j) ------------------------
    w_ck = weight.reshape(C, K).astype(x_ncl.dtype)
    taps = [jnp.pad(w_ck, ((0, 0), (j * stride, W_g - K - j * stride)))
            for j in range(group)]
    w_toep = jnp.stack(taps, axis=1).reshape(C * group, W_g)

    # ---- activation layout ----------------------------------------------------
    if n_groups == 1:
        # Free contiguous reshape: NCT row-major already matches the c*G + j
        # Toeplitz row order when the group covers all of T (no HBM transpose).
        x_in = x_ncl.reshape(N, 1, C * T)
    else:
        # TODO(synk): producers emitting (N, n_groups, C*G) directly would skip this relayout.
        x_in = (x_ncl.reshape(N, C, n_groups, group)
                      .transpose(0, 2, 1, 3)
                      .reshape(N, n_groups, C * group))

    # ---- tiling / VMEM budget -------------------------------------------------
    per_elem = n_groups * C * group * 4
    nb = _pick_batch_block(N, per_elem, _tensorcores_per_device())

    x_blk = nb * per_elem
    w_bytes = C * group * W_g * 4
    o_blk = nb * L_out * 4
    vmem_limit = int(min(48 << 20,
                         max(16 << 20, 2 * (x_blk + w_bytes + o_blk) + (4 << 20))))

    kern = functools.partial(_decoder_kernel, stride=stride,
                             group=group, n_groups=n_groups)

    out = pl.pallas_call(
        kern,
        out_shape=jax.ShapeDtypeStruct((N, 1, L_out), x_ncl.dtype),
        grid_spec=pltpu.PrefetchScalarGridSpec(
            num_scalar_prefetch=0,
            grid=(N // nb,),
            in_specs=[
                pl.BlockSpec((nb, n_groups, C * group), lambda n: (n, 0, 0)),
                pl.BlockSpec((C * group, W_g), lambda n: (0, 0)),
                pl.BlockSpec(memory_space=pltpu.MemorySpace.SMEM),
            ],
            out_specs=pl.BlockSpec((nb, 1, L_out), lambda n: (n, 0, 0)),
        ),
        compiler_params=pltpu.CompilerParams(
            dimension_semantics=("parallel",),
            vmem_limit_bytes=vmem_limit,
        ),
    )(x_in, w_toep, bias)

    return out


def _reference(x_ncl, weight, bias, kernel_size, stride):
    """Plain-JAX reference for ConvTranspose1d(C_in, 1, K, stride)."""
    N, C, T = x_ncl.shape
    L_out = (T - 1) * stride + kernel_size
    w = weight.reshape(C, kernel_size)
    p = jnp.einsum("nct,ck->ntk", x_ncl, w)           # (N, T, K)
    out = jnp.zeros((N, L_out), jnp.float32)
    for t in range(T):
        out = out.at[:, t * stride:t * stride + kernel_size].add(p[:, t, :])
    out = out + bias[0]
    return out[:, None, :]


if __name__ == "__main__":
    # Small shapes consistent with the module: Decoder(kernel_size=16, stride=8,
    # inputDim=256); input is (batch, inputDim, T_frames).
    N, C, T = 2, 256, 16
    kernel_size, stride = 16, 8

    key = jax.random.PRNGKey(0)
    kx, kw, kb = jax.random.split(key, 3)

    x = jax.random.normal(kx, (N, C, T), dtype=jnp.float32)

    # Deterministic parameter init (uniform in +/- 1/sqrt(C*K), PyTorch-style bound).
    bound = 1.0 / jnp.sqrt(jnp.float32(C * kernel_size))
    weight = jax.random.uniform(
        kw, (C, 1, kernel_size), dtype=jnp.float32, minval=-bound, maxval=bound
    )
    bias = jax.random.uniform(
        kb, (1,), dtype=jnp.float32, minval=-bound, maxval=bound
    )

    out = decoder_forward(x, weight, bias, kernel_size=kernel_size, stride=stride)
    out = jax.block_until_ready(out)

    ref = _reference(x, weight, bias, kernel_size, stride)
    assert out.shape == (N, 1, (T - 1) * stride + kernel_size), out.shape
    assert jnp.allclose(out, ref, atol=1e-4, rtol=1e-4), (
        float(jnp.max(jnp.abs(out - ref)))
    )

    print("KERNEL_OK")
</pallas_src>

<mosaic_0001>
module attributes {stable_mosaic.version = 11 : i64} {
  func.func @_decoder_kernel(%arg0: i32, %arg1: memref<2x1x4096xf32, #tpu.memory_space<vmem>>, %arg2: memref<4096x136xf32, #tpu.memory_space<vmem>>, %arg3: memref<1xf32, #tpu.memory_space<smem>>, %arg4: memref<2x1x136xf32, #tpu.memory_space<vmem>>) attributes {dimension_semantics = [#tpu.dimension_semantics<parallel>], iteration_bounds = array<i64: 1>, scalar_prefetch = 0 : i64, scratch_operands = 0 : i64, tpu.core_type = #tpu.core_type<tc>, window_params = [{transform_indices = @transform_0, window_bounds = array<i64: 2, 1, 4096>}, {pipeline_mode = #tpu.pipeline_mode<synchronous>, transform_indices = @transform_1, window_bounds = array<i64: 4096, 136>}, {transform_indices = @transform_2, window_bounds = array<i64: 1>}, {transform_indices = @transform_3, window_bounds = array<i64: 2, 1, 136>}]} {
    %c0 = arith.constant 0 : index
    %c0_0 = arith.constant 0 : index
    %c0_1 = arith.constant 0 : index
    %0 = vector.load %arg1[%c0, %c0_0, %c0_1] : memref<2x1x4096xf32, #tpu.memory_space<vmem>>, vector<2x1x4096xf32>
    %1 = vector.shape_cast %0 : vector<2x1x4096xf32> to vector<2x4096xf32>
    %c0_2 = arith.constant 0 : index
    %c0_3 = arith.constant 0 : index
    %2 = vector.load %arg2[%c0_2, %c0_3] : memref<4096x136xf32, #tpu.memory_space<vmem>>, vector<4096x136xf32>
    %cst = arith.constant dense<0.000000e+00> : vector<2x136xf32>
    %3 = tpu.matmul %1, %2, %cst {dimension_numbers = #tpu.dot_dimension_numbers<[1], [0], [0], [1], [0, 0, 1, 1], [], []>} : vector<2x4096xf32>, vector<4096x136xf32>, vector<2x136xf32> -> vector<2x136xf32>
    %c0_4 = arith.constant 0 : index
    %4 = memref.load %arg3[%c0_4] : memref<1xf32, #tpu.memory_space<smem>>
    %5 = vector.broadcast %4 : f32 to vector<2x136xf32>
    %6 = arith.addf %3, %5 : vector<2x136xf32>
    %7 = vector.shape_cast %6 : vector<2x136xf32> to vector<2x1x136xf32>
    %c0_5 = arith.constant 0 : index
    %c0_6 = arith.constant 0 : index
    %c0_7 = arith.constant 0 : index
    %8 = vector.load %arg4[%c0_5, %c0_6, %c0_7] : memref<2x1x136xf32, #tpu.memory_space<vmem>>, vector<2x1x136xf32>
    tpu.vector_store %arg4[%c0_5, %c0_6, %c0_7], %7 {strides = array<i32>} : memref<2x1x136xf32, #tpu.memory_space<vmem>>, vector<2x1x136xf32>,
    return
  }
  func.func @transform_0(%arg0: i32) -> (i32, i32, i32) {
    %c0_i32 = arith.constant 0 : i32
    %c0_i32_0 = arith.constant 0 : i32
    %c0_i32_1 = arith.constant 0 : i32
    return %arg0, %c0_i32, %c0_i32_0 : i32, i32, i32
  }
  func.func @transform_1(%arg0: i32) -> (i32, i32) {
    %c0_i32 = arith.constant 0 : i32
    %c0_i32_0 = arith.constant 0 : i32
    %c0_i32_1 = arith.constant 0 : i32
    return %c0_i32, %c0_i32_0 : i32, i32
  }
  func.func @transform_2(%arg0: i32) -> i32 {
    %c0_i32 = arith.constant 0 : i32
    %c0_i32_0 = arith.constant 0 : i32
    return %c0_i32 : i32
  }
  func.func @transform_3(%arg0: i32) -> (i32, i32, i32) {
    %c0_i32 = arith.constant 0 : i32
    %c0_i32_0 = arith.constant 0 : i32
    %c0_i32_1 = arith.constant 0 : i32
    return %arg0, %c0_i32, %c0_i32_0 : i32, i32, i32
  }
}

</mosaic_0001>

<llo_original>
// kernel: tpu_custom_call.1
$region0: #{tpu_custom_call.1}
  #allocation0 [shape = 'u32[]', space=smem, size = 0x4, offset = 0x4, fixed_abs, tag = 'smem constant byte address 0x4 - core index']
  #allocation1 [shape = 'u32[144,128]{1,0:T(1,128)}', space=vmem, size = 0x12000, scoped, tag = 'internal scratch']
  #allocation2 [shape = 'f32[1]{0:T(128)S(6)}', space=smem, size = 0x200, scoped, tag = 'scoped memory for tpu_custom_call.1']
  %s0 = inlined_call_operand.vmem [shape: f32[2,1,4096], index: 0, kind: input, shape index: {}]
  %s1 = inlined_call_operand.vmem [shape: f32[4096,136], index: 1, kind: input, shape index: {}]
  %s2 = inlined_call_operand.<no memory space> [shape: f32[1], index: 2, kind: input, shape index: {}]
  %s3 = inlined_call_operand.hbm [shape: f32[2,1,136], index: 3, kind: output, shape index: {}]
  %s4 = sld [smem:[#allocation0]]
  $region22: #{tpu_custom_call.1} parent=0
    _
  %s6 = ssub.s32 1, %s4
  %s7 = scalar_select 0, %s6, %s4
  %8 = sst [smem:[#allocation2]] %s2
  $region1: #{tpu_custom_call.1} parent=0
    #allocation3 [shape = 'u8[2048]{0}', space=vmem, size = 0x800, scoped, tag = 'output window, operand 0, single buffered']
    #allocation4 [shape = 's32[1]{0}', space=sflag, size = 0x4, scoped, tag = 'scoped memory for tpu_custom_call.1']
    %9 = vsyncpa [#allocation4], 0
    // Predicated region
    $region2: #{tpu_custom_call.1} parent=1 // pred_check
      _
    $region3: #{tpu_custom_call.1} parent=1 // pred_check_branch
      %11 = sbr.rel (0) target = $region5
    $region4: #{tpu_custom_call.1} parent=1 // pred_region
      _
    $region5: #{tpu_custom_call.1} parent=1 // pred_fallthru
      _
    // Predicated region
    $region6: #{tpu_custom_call.1} parent=1 // pred_check
      _
    $region7: #{tpu_custom_call.1} parent=1 // pred_check_branch
      %13 = sbr.rel (0) target = $region9
    $region8: #{tpu_custom_call.1} parent=1 // pred_region
      _
    $region9: #{tpu_custom_call.1} parent=1 // pred_fallthru
      _
    // Predicated region
    $region10: #{tpu_custom_call.1} parent=1 // pred_check
      _
    $region11: #{tpu_custom_call.1} parent=1 // pred_check_branch
      %15 = sbr.rel (0) target = $region13
    $region12: #{tpu_custom_call.1} parent=1 // pred_region
      _
    $region13: #{tpu_custom_call.1} parent=1 // pred_fallthru
      _
    %v16 = vld [vmem:[%s0] sm:$0xff]
    %v17 = vld [vmem:[%s0 + $0x8] sm:$0xff]
    %v18 = vld [vmem:[%s0 + $0x10] sm:$0xff]
    %v19 = vld [vmem:[%s0 + $0x18] sm:$0xff]
    %v20 = vld [vmem:[%s0 + $0x20] sm:$0xff]
    %v21 = vld [vmem:[%s0 + $0x28] sm:$0xff]
    %v22 = vld [vmem:[%s0 + $0x30] sm:$0xff]
    %v23 = vld [vmem:[%s0 + $0x38] sm:$0xff]
    %v24 = vld [vmem:[%s1] sm:$0xff]
    %v25 = vld [vmem:[%s1 + $0x8] sm:$0xff]
    %v26 = vld [vmem:[%s1 + $0x10] sm:$0xff]
    %v27 = vld [vmem:[%s1 + $0x18] sm:$0xff]
    %v28 = vld [vmem:[%s1 + $0x20] sm:$0xff]
    %v29 = vld [vmem:[%s1 + $0x28] sm:$0xff]
    %v30 = vld [vmem:[%s1 + $0x30] sm:$0xff]
    %v31 = vld [vmem:[%s1 + $0x38] sm:$0xff]
    %v32 = vld [vmem:[%s1 + $0x40] sm:$0xff]
    %v33 = vld [vmem:[%s1 + $0x48] sm:$0xff]
    %v34 = vld [vmem:[%s1 + $0x50] sm:$0xff]
    %v35 = vld [vmem:[%s1 + $0x58] sm:$0xff]
    %v36 = vld [vmem:[%s1 + $0x60] sm:$0xff]
    %v37 = vld [vmem:[%s1 + $0x68] sm:$0xff]
    %v38 = vld [vmem:[%s1 + $0x70] sm:$0xff]
    %v39 = vld [vmem:[%s1 + $0x78] sm:$0xff]
    %v40 = vld [vmem:[%s1 + $0x80] sm:$0xff]
    %v41 = vld [vmem:[%s1 + $0x88] sm:$0xff]
    %v42 = vld [vmem:[%s1 + $0x90] sm:$0xff]
    %v43 = vld [vmem:[%s1 + $0x98] sm:$0xff]
    %v44 = vld [vmem:[%s1 + $0xa0] sm:$0xff]
    %v45 = vld [vmem:[%s1 + $0xa8] sm:$0xff]
    %v46 = vld [vmem:[%s1 + $0xb0] sm:$0xff]
    %v47 = vld [vmem:[%s1 + $0xb8] sm:$0xff]
    %v48 = vld [vmem:[%s1 + $0xc0] sm:$0xff]
    %v49 = vld [vmem:[%s1 + $0xc8] sm:$0xff]
    %v50 = vld [vmem:[%s1 + $0xd0] sm:$0xff]
    %v51 = vld [vmem:[%s1 + $0xd8] sm:$0xff]
    %v52 = vld [vmem:[%s1 + $0xe0] sm:$0xff]
    %v53 = vld [vmem:[%s1 + $0xe8] sm:$0xff]
    %v54 = vld [vmem:[%s1 + $0xf0] sm:$0xff]
    %v55 = vld [vmem:[%s1 + $0xf8] sm:$0xff]
    %v56 = vld [vmem:[%s1 + $0x100] sm:$0xff]
    %v57 = vld [vmem:[%s1 + $0x108] sm:$0xff]
    %v58 = vld [vmem:[%s1 + $0x110] sm:$0xff]
    %v59 = vld [vmem:[%s1 + $0x118] sm:$0xff]
    %v60 = vld [vmem:[%s1 + $0x120] sm:$0xff]
    %v61 = vld [vmem:[%s1 + $0x128] sm:$0xff]
    %v62 = vld [vmem:[%s1 + $0x130] sm:$0xff]
    %v63 = vld [vmem:[%s1 + $0x138] sm:$0xff]
    %v64 = vld [vmem:[%s1 + $0x140] sm:$0xff]
    %v65 = vld [vmem:[%s1 + $0x148] sm:$0xff]
    %v66 = vld [vmem:[%s1 + $0x150] sm:$0xff]
    %v67 = vld [vmem:[%s1 + $0x158] sm:$0xff]
    %v68 = vld [vmem:[%s1 + $0x160] sm:$0xff]
    %v69 = vld [vmem:[%s1 + $0x168] sm:$0xff]
    %v70 = vld [vmem:[%s1 + $0x170] sm:$0xff]
    %v71 = vld [vmem:[%s1 + $0x178] sm:$0xff]
    %v72 = vld [vmem:[%s1 + $0x180] sm:$0xff]
    %v73 = vld [vmem:[%s1 + $0x188] sm:$0xff]
    %v74 = vld [vmem:[%s1 + $0x190] sm:$0xff]
    %v75 = vld [vmem:[%s1 + $0x198] sm:$0xff]
    %v76 = vld [vmem:[%s1 + $0x1a0] sm:$0xff]
    %v77 = vld [vmem:[%s1 + $0x1a8] sm:$0xff]
    %v78 = vld [vmem:[%s1 + $0x1b0] sm:$0xff]
    %v79 = vld [vmem:[%s1 + $0x1b8] sm:$0xff]
    %v80 = vld [vmem:[%s1 + $0x1c0] sm:$0xff]
    %v81 = vld [vmem:[%s1 + $0x1c8] sm:$0xff]
    %v82 = vld [vmem:[%s1 + $0x1d0] sm:$0xff]
    %v83 = vld [vmem:[%s1 + $0x1d8] sm:$0xff]
    %v84 = vld [vmem:[%s1 + $0x1e0] sm:$0xff]
    %v85 = vld [vmem:[%s1 + $0x1e8] sm:$0xff]
    %v86 = vld [vmem:[%s1 + $0x1f0] sm:$0xff]
    %v87 = vld [vmem:[%s1 + $0x1f8] sm:$0xff]
    %v88 = vld [vmem:[%s1 + $0x200] sm:$0xff]
    %v89 = vld [vmem:[%s1 + $0x208] sm:$0xff]
    %v90 = vld [vmem:[%s1 + $0x210] sm:$0xff]
    %v91 = vld [vmem:[%s1 + $0x218] sm:$0xff]
    %v92 = vld [vmem:[%s1 + $0x220] sm:$0xff]
    %v93 = vld [vmem:[%s1 + $0x228] sm:$0xff]
    %v94 = vld [vmem:[%s1 + $0x230] sm:$0xff]
    %v95 = vld [vmem:[%s1 + $0x238] sm:$0xff]
    %v96 = vld [vmem:[%s1 + $0x240] sm:$0xff]
    %v97 = vld [vmem:[%s1 + $0x248] sm:$0xff]
    %v98 = vld [vmem:[%s1 + $0x250] sm:$0xff]
    %v99 = vld [vmem:[%s1 + $0x258] sm:$0xff]
    %v100 = vld [vmem:[%s1 + $0x260] sm:$0xff]
    %v101 = vld [vmem:[%s1 + $0x268] sm:$0xff]
    %v102 = vld [vmem:[%s1 + $0x270] sm:$0xff]
    %v103 = vld [vmem:[%s1 + $0x278] sm:$0xff]
    %v104 = vld [vmem:[%s1 + $0x280] sm:$0xff]
    %v105 = vld [vmem:[%s1 + $0x288] sm:$0xff]
    %v106 = vld [vmem:[%s1 + $0x290] sm:$0xff]
    %v107 = vld [vmem:[%s1 + $0x298] sm:$0xff]
    %v108 = vld [vmem:[%s1 + $0x2a0] sm:$0xff]
    %v109 = vld [vmem:[%s1 + $0x2a8] sm:$0xff]
    %v110 = vld [vmem:[%s1 + $0x2b0] sm:$0xff]
    %v111 = vld [vmem:[%s1 + $0x2b8] sm:$0xff]
    %v112 = vld [vmem:[%s1 + $0x2c0] sm:$0xff]
    %v113 = vld [vmem:[%s1 + $0x2c8] sm:$0xff]
    %v114 = vld [vmem:[%s1 + $0x2d0] sm:$0xff]
    %v115 = vld [vmem:[%s1 + $0x2d8] sm:$0xff]
    %v116 = vld [vmem:[%s1 + $0x2e0] sm:$0xff]
    %v117 = vld [vmem:[%s1 + $0x2e8] sm:$0xff]
    %v118 = vld [vmem:[%s1 + $0x2f0] sm:$0xff]
    %v119 = vld [vmem:[%s1 + $0x2f8] sm:$0xff]
    %v120 = vld [vmem:[%s1 + $0x300] sm:$0xff]
    %v121 = vld [vmem:[%s1 + $0x308] sm:$0xff]
    %v122 = vld [vmem:[%s1 + $0x310] sm:$0xff]
    %v123 = vld [vmem:[%s1 + $0x318] sm:$0xff]
    %v124 = vld [vmem:[%s1 + $0x320] sm:$0xff]
    %v125 = vld [vmem:[%s1 + $0x328] sm:$0xff]
    %v126 = vld [vmem:[%s1 + $0x330] sm:$0xff]
    %v127 = vld [vmem:[%s1 + $0x338] sm:$0xff]
    %v128 = vld [vmem:[%s1 + $0x340] sm:$0xff]
    %v129 = vld [vmem:[%s1 + $0x348] sm:$0xff]
    %v130 = vld [vmem:[%s1 + $0x350] sm:$0xff]
    %v131 = vld [vmem:[%s1 + $0x358] sm:$0xff]
    %v132 = vld [vmem:[%s1 + $0x360] sm:$0xff]
    %v133 = vld [vmem:[%s1 + $0x368] sm:$0xff]
    %v134 = vld [vmem:[%s1 + $0x370] sm:$0xff]
    %v135 = vld [vmem:[%s1 + $0x378] sm:$0xff]
    %v136 = vld [vmem:[%s1 + $0x380] sm:$0xff]
    %v137 = vld [vmem:[%s1 + $0x388] sm:$0xff]
    %v138 = vld [vmem:[%s1 + $0x390] sm:$0xff]
    %v139 = vld [vmem:[%s1 + $0x398] sm:$0xff]
    %v140 = vld [vmem:[%s1 + $0x3a0] sm:$0xff]
    %v141 = vld [vmem:[%s1 + $0x3a8] sm:$0xff]
    %v142 = vld [vmem:[%s1 + $0x3b0] sm:$0xff]
    %v143 = vld [vmem:[%s1 + $0x3b8] sm:$0xff]
    %v144 = vld [vmem:[%s1 + $0x3c0] sm:$0xff]
    %v145 = vld [vmem:[%s1 + $0x3c8] sm:$0xff]
    %v146 = vld [vmem:[%s1 + $0x3d0] sm:$0xff]
    %v147 = vld [vmem:[%s1 + $0x3d8] sm:$0xff]
    %v148 = vld [vmem:[%s1 + $0x3e0] sm:$0xff]
    %v149 = vld [vmem:[%s1 + $0x3e8] sm:$0xff]
    %v150 = vld [vmem:[%s1 + $0x3f0] sm:$0xff]
    %v151 = vld [vmem:[%s1 + $0x3f8] sm:$0xff]
    %v152 = vld [vmem:[%s1 + $0x400] sm:$0xff]
    %v153 = vld [vmem:[%s1 + $0x408] sm:$0xff]
    %v154 = vld [vmem:[%s1 + $0x410] sm:$0xff]
    %v155 = vld [vmem:[%s1 + $0x418] sm:$0xff]
    %v156 = vld [vmem:[%s1 + $0x420] sm:$0xff]
    %v157 = vld [vmem:[%s1 + $0x428] sm:$0xff]
    %v158 = vld [vmem:[%s1 + $0x430] sm:$0xff]
    %v159 = vld [vmem:[%s1 + $0x438] sm:$0xff]
    %v160 = vld [vmem:[%s1 + $0x440] sm:$0xff]
    %v161 = vld [vmem:[%s1 + $0x448] sm:$0xff]
    %v162 = vld [vmem:[%s1 + $0x450] sm:$0xff]
    %v163 = vld [vmem:[%s1 + $0x458] sm:$0xff]
    %v164 = vld [vmem:[%s1 + $0x460] sm:$0xff]
    %v165 = vld [vmem:[%s1 + $0x468] sm:$0xff]
    %v166 = vld [vmem:[%s1 + $0x470] sm:$0xff]
    %v167 = vld [vmem:[%s1 + $0x478] sm:$0xff]
    %v168 = vld [vmem:[%s1 + $0x480] sm:$0xff]
    %v169 = vld [vmem:[%s1 + $0x488] sm:$0xff]
    %v170 = vld [vmem:[%s1 + $0x490] sm:$0xff]
    %v171 = vld [vmem:[%s1 + $0x498] sm:$0xff]
    %v172 = vld [vmem:[%s1 + $0x4a0] sm:$0xff]
    %v173 = vld [vmem:[%s1 + $0x4a8] sm:$0xff]
    %v174 = vld [vmem:[%s1 + $0x4b0] sm:$0xff]
    %v175 = vld [vmem:[%s1 + $0x4b8] sm:$0xff]
    %v176 = vld [vmem:[%s1 + $0x4c0] sm:$0xff]
    %v177 = vld [vmem:[%s1 + $0x4c8] sm:$0xff]
    %v178 = vld [vmem:[%s1 + $0x4d0] sm:$0xff]
    %v179 = vld [vmem:[%s1 + $0x4d8] sm:$0xff]
    %v180 = vld [vmem:[%s1 + $0x4e0] sm:$0xff]
    %v181 = vld [vmem:[%s1 + $0x4e8] sm:$0xff]
    %v182 = vld [vmem:[%s1 + $0x4f0] sm:$0xff]
    %v183 = vld [vmem:[%s1 + $0x4f8] sm:$0xff]
    %v184 = vld [vmem:[%s1 + $0x500] sm:$0xff]
    %v185 = vld [vmem:[%s1 + $0x508] sm:$0xff]
    %v186 = vld [vmem:[%s1 + $0x510] sm:$0xff]
    %v187 = vld [vmem:[%s1 + $0x518] sm:$0xff]
    %v188 = vld [vmem:[%s1 + $0x520] sm:$0xff]
    %v189 = vld [vmem:[%s1 + $0x528] sm:$0xff]
    %v190 = vld [vmem:[%s1 + $0x530] sm:$0xff]
    %v191 = vld [vmem:[%s1 + $0x538] sm:$0xff]
    %v192 = vld [vmem:[%s1 + $0x540] sm:$0xff]
    %v193 = vld [vmem:[%s1 + $0x548] sm:$0xff]
    %v194 = vld [vmem:[%s1 + $0x550] sm:$0xff]
    %v195 = vld [vmem:[%s1 + $0x558] sm:$0xff]
    %v196 = vld [vmem:[%s1 + $0x560] sm:$0xff]
    %v197 = vld [vmem:[%s1 + $0x568] sm:$0xff]
    %v198 = vld [vmem:[%s1 + $0x570] sm:$0xff]
    %v199 = vld [vmem:[%s1 + $0x578] sm:$0xff]
    %v200 = vld [vmem:[%s1 + $0x580] sm:$0xff]
    %v201 = vld [vmem:[%s1 + $0x588] sm:$0xff]
    %v202 = vld [vmem:[%s1 + $0x590] sm:$0xff]
    %v203 = vld [vmem:[%s1 + $0x598] sm:$0xff]
    %v204 = vld [vmem:[%s1 + $0x5a0] sm:$0xff]
    %v205 = vld [vmem:[%s1 + $0x5a8] sm:$0xff]
    %v206 = vld [vmem:[%s1 + $0x5b0] sm:$0xff]
    %v207 = vld [vmem:[%s1 + $0x5b8] sm:$0xff]
    %v208 = vld [vmem:[%s1 + $0x5c0] sm:$0xff]
    %v209 = vld [vmem:[%s1 + $0x5c8] sm:$0xff]
    %v210 = vld [vmem:[%s1 + $0x5d0] sm:$0xff]
    %v211 = vld [vmem:[%s1 + $0x5d8] sm:$0xff]
    %v212 = vld [vmem:[%s1 + $0x5e0] sm:$0xff]
    %v213 = vld [vmem:[%s1 + $0x5e8] sm:$0xff]
    %v214 = vld [vmem:[%s1 + $0x5f0] sm:$0xff]
    %v215 = vld [vmem:[%s1 + $0x5f8] sm:$0xff]
    %v216 = vld [vmem:[%s1 + $0x600] sm:$0xff]
    %v217 = vld [vmem:[%s1 + $0x608] sm:$0xff]
    %v218 = vld [vmem:[%s1 + $0x610] sm:$0xff]
    %v219 = vld [vmem:[%s1 + $0x618] sm:$0xff]
    %v220 = vld [vmem:[%s1 + $0x620] sm:$0xff]
    %v221 = vld [vmem:[%s1 + $0x628] sm:$0xff]
    %v222 = vld [vmem:[%s1 + $0x630] sm:$0xff]
    %v223 = vld [vmem:[%s1 + $0x638] sm:$0xff]
    %v224 = vld [vmem:[%s1 + $0x640] sm:$0xff]
    %v225 = vld [vmem:[%s1 + $0x648] sm:$0xff]
    %v226 = vld [vmem:[%s1 + $0x650] sm:$0xff]
    %v227 = vld [vmem:[%s1 + $0x658] sm:$0xff]
    %v228 = vld [vmem:[%s1 + $0x660] sm:$0xff]
    %v229 = vld [vmem:[%s1 + $0x668] sm:$0xff]
    %v230 = vld [vmem:[%s1 + $0x670] sm:$0xff]
    %v231 = vld [vmem:[%s1 + $0x678] sm:$0xff]
    %v232 = vld [vmem:[%s1 + $0x680] sm:$0xff]
    %v233 = vld [vmem:[%s1 + $0x688] sm:$0xff]
    %v234 = vld [vmem:[%s1 + $0x690] sm:$0xff]
    %v235 = vld [vmem:[%s1 + $0x698] sm:$0xff]
    %v236 = vld [vmem:[%s1 + $0x6a0] sm:$0xff]
    %v237 = vld [vmem:[%s1 + $0x6a8] sm:$0xff]
    %v238 = vld [vmem:[%s1 + $0x6b0] sm:$0xff]
    %v239 = vld [vmem:[%s1 + $0x6b8] sm:$0xff]
    %v240 = vld [vmem:[%s1 + $0x6c0] sm:$0xff]
    %v241 = vld [vmem:[%s1 + $0x6c8] sm:$0xff]
    %v242 = vld [vmem:[%s1 + $0x6d0] sm:$0xff]
    %v243 = vld [vmem:[%s1 + $0x6d8] sm:$0xff]
    %v244 = vld [vmem:[%s1 + $0x6e0] sm:$0xff]
    %v245 = vld [vmem:[%s1 + $0x6e8] sm:$0xff]
    %v246 = vld [vmem:[%s1 + $0x6f0] sm:$0xff]
    %v247 = vld [vmem:[%s1 + $0x6f8] sm:$0xff]
    %v248 = vld [vmem:[%s1 + $0x700] sm:$0xff]
    %v249 = vld [vmem:[%s1 + $0x708] sm:$0xff]
    %v250 = vld [vmem:[%s1 + $0x710] sm:$0xff]
    %v251 = vld [vmem:[%s1 + $0x718] sm:$0xff]
    %v252 = vld [vmem:[%s1 + $0x720] sm:$0xff]
    %v253 = vld [vmem:[%s1 + $0x728] sm:$0xff]
    %v254 = vld [vmem:[%s1 + $0x730] sm:$0xff]
    %v255 = vld [vmem:[%s1 + $0x738] sm:$0xff]
    %v256 = vld [vmem:[%s1 + $0x740] sm:$0xff]
    %v257 = vld [vmem:[%s1 + $0x748] sm:$0xff]
    %v258 = vld [vmem:[%s1 + $0x750] sm:$0xff]
    %v259 = vld [vmem:[%s1 + $0x758] sm:$0xff]
    %v260 = vld [vmem:[%s1 + $0x760] sm:$0xff]
    %v261 = vld [vmem:[%s1 + $0x768] sm:$0xff]
    %v262 = vld [vmem:[%s1 + $0x770] sm:$0xff]
    %v263 = vld [vmem:[%s1 + $0x778] sm:$0xff]
    %v264 = vld [vmem:[%s1 + $0x780] sm:$0xff]
    %v265 = vld [vmem:[%s1 + $0x788] sm:$0xff]
    %v266 = vld [vmem:[%s1 + $0x790] sm:$0xff]
    %v267 = vld [vmem:[%s1 + $0x798] sm:$0xff]
    %v268 = vld [vmem:[%s1 + $0x7a0] sm:$0xff]
    %v269 = vld [vmem:[%s1 + $0x7a8] sm:$0xff]
    %v270 = vld [vmem:[%s1 + $0x7b0] sm:$0xff]
    %v271 = vld [vmem:[%s1 + $0x7b8] sm:$0xff]
    %v272 = vld [vmem:[%s1 + $0x7c0] sm:$0xff]
    %v273 = vld [vmem:[%s1 + $0x7c8] sm:$0xff]
    %v274 = vld [vmem:[%s1 + $0x7d0] sm:$0xff]
    %v275 = vld [vmem:[%s1 + $0x7d8] sm:$0xff]
    %v276 = vld [vmem:[%s1 + $0x7e0] sm:$0xff]
    %v277 = vld [vmem:[%s1 + $0x7e8] sm:$0xff]
    %v278 = vld [vmem:[%s1 + $0x7f0] sm:$0xff]
    %v279 = vld [vmem:[%s1 + $0x7f8] sm:$0xff]
    %v280 = vld [vmem:[%s1 + $0x800] sm:$0xff]
    %v281 = vld [vmem:[%s1 + $0x808] sm:$0xff]
    %v282 = vld [vmem:[%s1 + $0x810] sm:$0xff]
    %v283 = vld [vmem:[%s1 + $0x818] sm:$0xff]
    %v284 = vld [vmem:[%s1 + $0x820] sm:$0xff]
    %v285 = vld [vmem:[%s1 + $0x828] sm:$0xff]
    %v286 = vld [vmem:[%s1 + $0x830] sm:$0xff]
    %v287 = vld [vmem:[%s1 + $0x838] sm:$0xff]
    %v288 = vld [vmem:[%s1 + $0x840] sm:$0xff]
    %v289 = vld [vmem:[%s1 + $0x848] sm:$0xff]
    %v290 = vld [vmem:[%s1 + $0x850] sm:$0xff]
    %v291 = vld [vmem:[%s1 + $0x858] sm:$0xff]
    %v292 = vld [vmem:[%s1 + $0x860] sm:$0xff]
    %v293 = vld [vmem:[%s1 + $0x868] sm:$0xff]
    %v294 = vld [vmem:[%s1 + $0x870] sm:$0xff]
    %v295 = vld [vmem:[%s1 + $0x878] sm:$0xff]
    %v296 = vld [vmem:[%s1 + $0x880] sm:$0xff]
    %v297 = vld [vmem:[%s1 + $0x888] sm:$0xff]
    %v298 = vld [vmem:[%s1 + $0x890] sm:$0xff]
    %v299 = vld [vmem:[%s1 + $0x898] sm:$0xff]
    %v300 = vld [vmem:[%s1 + $0x8a0] sm:$0xff]
    %v301 = vld [vmem:[%s1 + $0x8a8] sm:$0xff]
    %v302 = vld [vmem:[%s1 + $0x8b0] sm:$0xff]
    %v303 = vld [vmem:[%s1 + $0x8b8] sm:$0xff]
    %v304 = vld [vmem:[%s1 + $0x8c0] sm:$0xff]
    %v305 = vld [vmem:[%s1 + $0x8c8] sm:$0xff]
    %v306 = vld [vmem:[%s1 + $0x8d0] sm:$0xff]
    %v307 = vld [vmem:[%s1 + $0x8d8] sm:$0xff]
    %v308 = vld [vmem:[%s1 + $0x8e0] sm:$0xff]
    %v309 = vld [vmem:[%s1 + $0x8e8] sm:$0xff]
    %v310 = vld [vmem:[%s1 + $0x8f0] sm:$0xff]
    %v311 = vld [vmem:[%s1 + $0x8f8] sm:$0xff]
    %v312 = vld [vmem:[%s1 + $0x900] sm:$0xff]
    %v313 = vld [vmem:[%s1 + $0x908] sm:$0xff]
    %v314 = vld [vmem:[%s1 + $0x910] sm:$0xff]
    %v315 = vld [vmem:[%s1 + $0x918] sm:$0xff]
    %v316 = vld [vmem:[%s1 + $0x920] sm:$0xff]
    %v317 = vld [vmem:[%s1 + $0x928] sm:$0xff]
    %v318 = vld [vmem:[%s1 + $0x930] sm:$0xff]
    %v319 = vld [vmem:[%s1 + $0x938] sm:$0xff]
    %v320 = vld [vmem:[%s1 + $0x940] sm:$0xff]
    %v321 = vld [vmem:[%s1 + $0x948] sm:$0xff]
    %v322 = vld [vmem:[%s1 + $0x950] sm:$0xff]
    %v323 = vld [vmem:[%s1 + $0x958] sm:$0xff]
    %v324 = vld [vmem:[%s1 + $0x960] sm:$0xff]
    %v325 = vld [vmem:[%s1 + $0x968] sm:$0xff]
    %v326 = vld [vmem:[%s1 + $0x970] sm:$0xff]
    %v327 = vld [vmem:[%s1 + $0x978] sm:$0xff]
    %v328 = vld [vmem:[%s1 + $0x980] sm:$0xff]
    %v329 = vld [vmem:[%s1 + $0x988] sm:$0xff]
    %v330 = vld [vmem:[%s1 + $0x990] sm:$0xff]
    %v331 = vld [vmem:[%s1 + $0x998] sm:$0xff]
    %v332 = vld [vmem:[%s1 + $0x9a0] sm:$0xff]
    %v333 = vld [vmem:[%s1 + $0x9a8] sm:$0xff]
    %v334 = vld [vmem:[%s1 + $0x9b0] sm:$0xff]
    %v335 = vld [vmem:[%s1 + $0x9b8] sm:$0xff]
    %v336 = vld [vmem:[%s1 + $0x9c0] sm:$0xff]
    %v337 = vld [vmem:[%s1 + $0x9c8] sm:$0xff]
    %v338 = vld [vmem:[%s1 + $0x9d0] sm:$0xff]
    %v339 = vld [vmem:[%s1 + $0x9d8] sm:$0xff]
    %v340 = vld [vmem:[%s1 + $0x9e0] sm:$0xff]
    %v341 = vld [vmem:[%s1 + $0x9e8] sm:$0xff]
    %v342 = vld [vmem:[%s1 + $0x9f0] sm:$0xff]
    %v343 = vld [vmem:[%s1 + $0x9f8] sm:$0xff]
    %v344 = vld [vmem:[%s1 + $0xa00] sm:$0xff]
    %v345 = vld [vmem:[%s1 + $0xa08] sm:$0xff]
    %v346 = vld [vmem:[%s1 + $0xa10] sm:$0xff]
    %v347 = vld [vmem:[%s1 + $0xa18] sm:$0xff]
    %v348 = vld [vmem:[%s1 + $0xa20] sm:$0xff]
    %v349 = vld [vmem:[%s1 + $0xa28] sm:$0xff]
    %v350 = vld [vmem:[%s1 + $0xa30] sm:$0xff]
    %v351 = vld [vmem:[%s1 + $0xa38] sm:$0xff]
    %v352 = vld [vmem:[%s1 + $0xa40] sm:$0xff]
    %v353 = vld [vmem:[%s1 + $0xa48] sm:$0xff]
    %v354 = vld [vmem:[%s1 + $0xa50] sm:$0xff]
    %v355 = vld [vmem:[%s1 + $0xa58] sm:$0xff]
    %v356 = vld [vmem:[%s1 + $0xa60] sm:$0xff]
    %v357 = vld [vmem:[%s1 + $0xa68] sm:$0xff]
    %v358 = vld [vmem:[%s1 + $0xa70] sm:$0xff]
    %v359 = vld [vmem:[%s1 + $0xa78] sm:$0xff]
    %v360 = vld [vmem:[%s1 + $0xa80] sm:$0xff]
    %v361 = vld [vmem:[%s1 + $0xa88] sm:$0xff]
    %v362 = vld [vmem:[%s1 + $0xa90] sm:$0xff]
    %v363 = vld [vmem:[%s1 + $0xa98] sm:$0xff]
    %v364 = vld [vmem:[%s1 + $0xaa0] sm:$0xff]
    %v365 = vld [vmem:[%s1 + $0xaa8] sm:$0xff]
    %v366 = vld [vmem:[%s1 + $0xab0] sm:$0xff]
    %v367 = vld [vmem:[%s1 + $0xab8] sm:$0xff]
    %v368 = vld [vmem:[%s1 + $0xac0] sm:$0xff]
    %v369 = vld [vmem:[%s1 + $0xac8] sm:$0xff]
    %v370 = vld [vmem:[%s1 + $0xad0] sm:$0xff]
    %v371 = vld [vmem:[%s1 + $0xad8] sm:$0xff]
    %v372 = vld [vmem:[%s1 + $0xae0] sm:$0xff]
    %v373 = vld [vmem:[%s1 + $0xae8] sm:$0xff]
    %v374 = vld [vmem:[%s1 + $0xaf0] sm:$0xff]
    %v375 = vld [vmem:[%s1 + $0xaf8] sm:$0xff]
    %v376 = vld [vmem:[%s1 + $0xb00] sm:$0xff]
    %v377 = vld [vmem:[%s1 + $0xb08] sm:$0xff]
    %v378 = vld [vmem:[%s1 + $0xb10] sm:$0xff]
    %v379 = vld [vmem:[%s1 + $0xb18] sm:$0xff]
    %v380 = vld [vmem:[%s1 + $0xb20] sm:$0xff]
    %v381 = vld [vmem:[%s1 + $0xb28] sm:$0xff]
    %v382 = vld [vmem:[%s1 + $0xb30] sm:$0xff]
    %v383 = vld [vmem:[%s1 + $0xb38] sm:$0xff]
    %v384 = vld [vmem:[%s1 + $0xb40] sm:$0xff]
    %v385 = vld [vmem:[%s1 + $0xb48] sm:$0xff]
    %v386 = vld [vmem:[%s1 + $0xb50] sm:$0xff]
    %v387 = vld [vmem:[%s1 + $0xb58] sm:$0xff]
    %v388 = vld [vmem:[%s1 + $0xb60] sm:$0xff]
    %v389 = vld [vmem:[%s1 + $0xb68] sm:$0xff]
    %v390 = vld [vmem:[%s1 + $0xb70] sm:$0xff]
    %v391 = vld [vmem:[%s1 + $0xb78] sm:$0xff]
    %v392 = vld [vmem:[%s1 + $0xb80] sm:$0xff]
    %v393 = vld [vmem:[%s1 + $0xb88] sm:$0xff]
    %v394 = vld [vmem:[%s1 + $0xb90] sm:$0xff]
    %v395 = vld [vmem:[%s1 + $0xb98] sm:$0xff]
    %v396 = vld [vmem:[%s1 + $0xba0] sm:$0xff]
    %v397 = vld [vmem:[%s1 + $0xba8] sm:$0xff]
    %v398 = vld [vmem:[%s1 + $0xbb0] sm:$0xff]
    %v399 = vld [vmem:[%s1 + $0xbb8] sm:$0xff]
    %v400 = vld [vmem:[%s1 + $0xbc0] sm:$0xff]
    %v401 = vld [vmem:[%s1 + $0xbc8] sm:$0xff]
    %v402 = vld [vmem:[%s1 + $0xbd0] sm:$0xff]
    %v403 = vld [vmem:[%s1 + $0xbd8] sm:$0xff]
    %v404 = vld [vmem:[%s1 + $0xbe0] sm:$0xff]
    %v405 = vld [vmem:[%s1 + $0xbe8] sm:$0xff]
    %v406 = vld [vmem:[%s1 + $0xbf0] sm:$0xff]
    %v407 = vld [vmem:[%s1 + $0xbf8] sm:$0xff]
    %v408 = vld [vmem:[%s1 + $0xc00] sm:$0xff]
    %v409 = vld [vmem:[%s1 + $0xc08] sm:$0xff]
    %v410 = vld [vmem:[%s1 + $0xc10] sm:$0xff]
    %v411 = vld [vmem:[%s1 + $0xc18] sm:$0xff]
    %v412 = vld [vmem:[%s1 + $0xc20] sm:$0xff]
    %v413 = vld [vmem:[%s1 + $0xc28] sm:$0xff]
    %v414 = vld [vmem:[%s1 + $0xc30] sm:$0xff]
    %v415 = vld [vmem:[%s1 + $0xc38] sm:$0xff]
    %v416 = vld [vmem:[%s1 + $0xc40] sm:$0xff]
    %v417 = vld [vmem:[%s1 + $0xc48] sm:$0xff]
    %v418 = vld [vmem:[%s1 + $0xc50] sm:$0xff]
    %v419 = vld [vmem:[%s1 + $0xc58] sm:$0xff]
    %v420 = vld [vmem:[%s1 + $0xc60] sm:$0xff]
    %v421 = vld [vmem:[%s1 + $0xc68] sm:$0xff]
    %v422 = vld [vmem:[%s1 + $0xc70] sm:$0xff]
    %v423 = vld [vmem:[%s1 + $0xc78] sm:$0xff]
    %v424 = vld [vmem:[%s1 + $0xc80] sm:$0xff]
    %v425 = vld [vmem:[%s1 + $0xc88] sm:$0xff]
    %v426 = vld [vmem:[%s1 + $0xc90] sm:$0xff]
    %v427 = vld [vmem:[%s1 + $0xc98] sm:$0xff]
    %v428 = vld [vmem:[%s1 + $0xca0] sm:$0xff]
    %v429 = vld [vmem:[%s1 + $0xca8] sm:$0xff]
    %v430 = vld [vmem:[%s1 + $0xcb0] sm:$0xff]
    %v431 = vld [vmem:[%s1 + $0xcb8] sm:$0xff]
    %v432 = vld [vmem:[%s1 + $0xcc0] sm:$0xff]
    %v433 = vld [vmem:[%s1 + $0xcc8] sm:$0xff]
    %v434 = vld [vmem:[%s1 + $0xcd0] sm:$0xff]
    %v435 = vld [vmem:[%s1 + $0xcd8] sm:$0xff]
    %v436 = vld [vmem:[%s1 + $0xce0] sm:$0xff]
    %v437 = vld [vmem:[%s1 + $0xce8] sm:$0xff]
    %v438 = vld [vmem:[%s1 + $0xcf0] sm:$0xff]
    %v439 = vld [vmem:[%s1 + $0xcf8] sm:$0xff]
    %v440 = vld [vmem:[%s1 + $0xd00] sm:$0xff]
    %v441 = vld [vmem:[%s1 + $0xd08] sm:$0xff]
    %v442 = vld [vmem:[%s1 + $0xd10] sm:$0xff]
    %v443 = vld [vmem:[%s1 + $0xd18] sm:$0xff]
    %v444 = vld [vmem:[%s1 + $0xd20] sm:$0xff]
    %v445 = vld [vmem:[%s1 + $0xd28] sm:$0xff]
    %v446 = vld [vmem:[%s1 + $0xd30] sm:$0xff]
    %v447 = vld [vmem:[%s1 + $0xd38] sm:$0xff]
    %v448 = vld [vmem:[%s1 + $0xd40] sm:$0xff]
    %v449 = vld [vmem:[%s1 + $0xd48] sm:$0xff]
    %v450 = vld [vmem:[%s1 + $0xd50] sm:$0xff]
    %v451 = vld [vmem:[%s1 + $0xd58] sm:$0xff]
    %v452 = vld [vmem:[%s1 + $0xd60] sm:$0xff]
    %v453 = vld [vmem:[%s1 + $0xd68] sm:$0xff]
    %v454 = vld [vmem:[%s1 + $0xd70] sm:$0xff]
    %v455 = vld [vmem:[%s1 + $0xd78] sm:$0xff]
    %v456 = vld [vmem:[%s1 + $0xd80] sm:$0xff]
    %v457 = vld [vmem:[%s1 + $0xd88] sm:$0xff]
    %v458 = vld [vmem:[%s1 + $0xd90] sm:$0xff]
    %v459 = vld [vmem:[%s1 + $0xd98] sm:$0xff]
    %v460 = vld [vmem:[%s1 + $0xda0] sm:$0xff]
    %v461 = vld [vmem:[%s1 + $0xda8] sm:$0xff]
    %v462 = vld [vmem:[%s1 + $0xdb0] sm:$0xff]
    %v463 = vld [vmem:[%s1 + $0xdb8] sm:$0xff]
    %v464 = vld [vmem:[%s1 + $0xdc0] sm:$0xff]
    %v465 = vld [vmem:[%s1 + $0xdc8] sm:$0xff]
    %v466 = vld [vmem:[%s1 + $0xdd0] sm:$0xff]
    %v467 = vld [vmem:[%s1 + $0xdd8] sm:$0xff]
    %v468 = vld [vmem:[%s1 + $0xde0] sm:$0xff]
    %v469 = vld [vmem:[%s1 + $0xde8] sm:$0xff]
    %v470 = vld [vmem:[%s1 + $0xdf0] sm:$0xff]
    %v471 = vld [vmem:[%s1 + $0xdf8] sm:$0xff]
    %v472 = vld [vmem:[%s1 + $0xe00] sm:$0xff]
    %v473 = vld [vmem:[%s1 + $0xe08] sm:$0xff]
    %v474 = vld [vmem:[%s1 + $0xe10] sm:$0xff]
    %v475 = vld [vmem:[%s1 + $0xe18] sm:$0xff]
    %v476 = vld [vmem:[%s1 + $0xe20] sm:$0xff]
    %v477 = vld [vmem:[%s1 + $0xe28] sm:$0xff]
    %v478 = vld [vmem:[%s1 + $0xe30] sm:$0xff]
    %v479 = vld [vmem:[%s1 + $0xe38] sm:$0xff]
    %v480 = vld [vmem:[%s1 + $0xe40] sm:$0xff]
    %v481 = vld [vmem:[%s1 + $0xe48] sm:$0xff]
    %v482 = vld [vmem:[%s1 + $0xe50] sm:$0xff]
    %v483 = vld [vmem:[%s1 + $0xe58] sm:$0xff]
    %v484 = vld [vmem:[%s1 + $0xe60] sm:$0xff]
    %v485 = vld [vmem:[%s1 + $0xe68] sm:$0xff]
    %v486 = vld [vmem:[%s1 + $0xe70] sm:$0xff]
    %v487 = vld [vmem:[%s1 + $0xe78] sm:$0xff]
    %v488 = vld [vmem:[%s1 + $0xe80] sm:$0xff]
    %v489 = vld [vmem:[%s1 + $0xe88] sm:$0xff]
    %v490 = vld [vmem:[%s1 + $0xe90] sm:$0xff]
    %v491 = vld [vmem:[%s1 + $0xe98] sm:$0xff]
    %v492 = vld [vmem:[%s1 + $0xea0] sm:$0xff]
    %v493 = vld [vmem:[%s1 + $0xea8] sm:$0xff]
    %v494 = vld [vmem:[%s1 + $0xeb0] sm:$0xff]
    %v495 = vld [vmem:[%s1 + $0xeb8] sm:$0xff]
    %v496 = vld [vmem:[%s1 + $0xec0] sm:$0xff]
    %v497 = vld [vmem:[%s1 + $0xec8] sm:$0xff]
    %v498 = vld [vmem:[%s1 + $0xed0] sm:$0xff]
    %v499 = vld [vmem:[%s1 + $0xed8] sm:$0xff]
    %v500 = vld [vmem:[%s1 + $0xee0] sm:$0xff]
    %v501 = vld [vmem:[%s1 + $0xee8] sm:$0xff]
    %v502 = vld [vmem:[%s1 + $0xef0] sm:$0xff]
    %v503 = vld [vmem:[%s1 + $0xef8] sm:$0xff]
    %v504 = vld [vmem:[%s1 + $0xf00] sm:$0xff]
    %v505 = vld [vmem:[%s1 + $0xf08] sm:$0xff]
    %v506 = vld [vmem:[%s1 + $0xf10] sm:$0xff]
    %v507 = vld [vmem:[%s1 + $0xf18] sm:$0xff]
    %v508 = vld [vmem:[%s1 + $0xf20] sm:$0xff]
    %v509 = vld [vmem:[%s1 + $0xf28] sm:$0xff]
    %v510 = vld [vmem:[%s1 + $0xf30] sm:$0xff]
    %v511 = vld [vmem:[%s1 + $0xf38] sm:$0xff]
    %v512 = vld [vmem:[%s1 + $0xf40] sm:$0xff]
    %v513 = vld [vmem:[%s1 + $0xf48] sm:$0xff]
    %v514 = vld [vmem:[%s1 + $0xf50] sm:$0xff]
    %v515 = vld [vmem:[%s1 + $0xf58] sm:$0xff]
    %v516 = vld [vmem:[%s1 + $0xf60] sm:$0xff]
    %v517 = vld [vmem:[%s1 + $0xf68] sm:$0xff]
    %v518 = vld [vmem:[%s1 + $0xf70] sm:$0xff]
    %v519 = vld [vmem:[%s1 + $0xf78] sm:$0xff]
    %v520 = vld [vmem:[%s1 + $0xf80] sm:$0xff]
    %v521 = vld [vmem:[%s1 + $0xf88] sm:$0xff]
    %v522 = vld [vmem:[%s1 + $0xf90] sm:$0xff]
    %v523 = vld [vmem:[%s1 + $0xf98] sm:$0xff]
    %v524 = vld [vmem:[%s1 + $0xfa0] sm:$0xff]
    %v525 = vld [vmem:[%s1 + $0xfa8] sm:$0xff]
    %v526 = vld [vmem:[%s1 + $0xfb0] sm:$0xff]
    %v527 = vld [vmem:[%s1 + $0xfb8] sm:$0xff]
    %v528 = vld [vmem:[%s1 + $0xfc0] sm:$0xff]
    %v529 = vld [vmem:[%s1 + $0xfc8] sm:$0xff]
    %v530 = vld [vmem:[%s1 + $0xfd0] sm:$0xff]
    %v531 = vld [vmem:[%s1 + $0xfd8] sm:$0xff]
    %v532 = vld [vmem:[%s1 + $0xfe0] sm:$0xff]
    %v533 = vld [vmem:[%s1 + $0xfe8] sm:$0xff]
    %v534 = vld [vmem:[%s1 + $0xff0] sm:$0xff]
    %v535 = vld [vmem:[%s1 + $0xff8] sm:$0xff]
    %v536 = vld [vmem:[%s1 + $0x1000] sm:$0xff]
    %v537 = vld [vmem:[%s1 + $0x1008] sm:$0xff]
    %v538 = vld [vmem:[%s1 + $0x1010] sm:$0xff]
    %v539 = vld [vmem:[%s1 + $0x1018] sm:$0xff]
    %v540 = vld [vmem:[%s1 + $0x1020] sm:$0xff]
    %v541 = vld [vmem:[%s1 + $0x1028] sm:$0xff]
    %v542 = vld [vmem:[%s1 + $0x1030] sm:$0xff]
    %v543 = vld [vmem:[%s1 + $0x1038] sm:$0xff]
    %v544 = vld [vmem:[%s1 + $0x1040] sm:$0xff]
    %v545 = vld [vmem:[%s1 + $0x1048] sm:$0xff]
    %v546 = vld [vmem:[%s1 + $0x1050] sm:$0xff]
    %v547 = vld [vmem:[%s1 + $0x1058] sm:$0xff]
    %v548 = vld [vmem:[%s1 + $0x1060] sm:$0xff]
    %v549 = vld [vmem:[%s1 + $0x1068] sm:$0xff]
    %v550 = vld [vmem:[%s1 + $0x1070] sm:$0xff]
    %v551 = vld [vmem:[%s1 + $0x1078] sm:$0xff]
    %v552 = vld [vmem:[%s1 + $0x1080] sm:$0xff]
    %v553 = vld [vmem:[%s1 + $0x1088] sm:$0xff]
    %v554 = vld [vmem:[%s1 + $0x1090] sm:$0xff]
    %v555 = vld [vmem:[%s1 + $0x1098] sm:$0xff]
    %v556 = vld [vmem:[%s1 + $0x10a0] sm:$0xff]
    %v557 = vld [vmem:[%s1 + $0x10a8] sm:$0xff]
    %v558 = vld [vmem:[%s1 + $0x10b0] sm:$0xff]
    %v559 = vld [vmem:[%s1 + $0x10b8] sm:$0xff]
    %v560 = vld [vmem:[%s1 + $0x10c0] sm:$0xff]
    %v561 = vld [vmem:[%s1 + $0x10c8] sm:$0xff]
    %v562 = vld [vmem:[%s1 + $0x10d0] sm:$0xff]
    %v563 = vld [vmem:[%s1 + $0x10d8] sm:$0xff]
    %v564 = vld [vmem:[%s1 + $0x10e0] sm:$0xff]
    %v565 = vld [vmem:[%s1 + $0x10e8] sm:$0xff]
    %v566 = vld [vmem:[%s1 + $0x10f0] sm:$0xff]
    %v567 = vld [vmem:[%s1 + $0x10f8] sm:$0xff]
    %v568 = vld [vmem:[%s1 + $0x1100] sm:$0xff]
    %v569 = vld [vmem:[%s1 + $0x1108] sm:$0xff]
    %v570 = vld [vmem:[%s1 + $0x1110] sm:$0xff]
    %v571 = vld [vmem:[%s1 + $0x1118] sm:$0xff]
    %v572 = vld [vmem:[%s1 + $0x1120] sm:$0xff]
    %v573 = vld [vmem:[%s1 + $0x1128] sm:$0xff]
    %v574 = vld [vmem:[%s1 + $0x1130] sm:$0xff]
    %v575 = vld [vmem:[%s1 + $0x1138] sm:$0xff]
    %v576 = vld [vmem:[%s1 + $0x1140] sm:$0xff]
    %v577 = vld [vmem:[%s1 + $0x1148] sm:$0xff]
    %v578 = vld [vmem:[%s1 + $0x1150] sm:$0xff]
    %v579 = vld [vmem:[%s1 + $0x1158] sm:$0xff]
    %v580 = vld [vmem:[%s1 + $0x1160] sm:$0xff]
    %v581 = vld [vmem:[%s1 + $0x1168] sm:$0xff]
    %v582 = vld [vmem:[%s1 + $0x1170] sm:$0xff]
    %v583 = vld [vmem:[%s1 + $0x1178] sm:$0xff]
    %v584 = vld [vmem:[%s1 + $0x1180] sm:$0xff]
    %v585 = vld [vmem:[%s1 + $0x1188] sm:$0xff]
    %v586 = vld [vmem:[%s1 + $0x1190] sm:$0xff]
    %v587 = vld [vmem:[%s1 + $0x1198] sm:$0xff]
    %v588 = vld [vmem:[%s1 + $0x11a0] sm:$0xff]
    %v589 = vld [vmem:[%s1 + $0x11a8] sm:$0xff]
    %v590 = vld [vmem:[%s1 + $0x11b0] sm:$0xff]
    %v591 = vld [vmem:[%s1 + $0x11b8] sm:$0xff]
    %v592 = vld [vmem:[%s1 + $0x11c0] sm:$0xff]
    %v593 = vld [vmem:[%s1 + $0x11c8] sm:$0xff]
    %v594 = vld [vmem:[%s1 + $0x11d0] sm:$0xff]
    %v595 = vld [vmem:[%s1 + $0x11d8] sm:$0xff]
    %v596 = vld [vmem:[%s1 + $0x11e0] sm:$0xff]
    %v597 = vld [vmem:[%s1 + $0x11e8] sm:$0xff]
    %v598 = vld [vmem:[%s1 + $0x11f0] sm:$0xff]
    %v599 = vld [vmem:[%s1 + $0x11f8] sm:$0xff]
    %v600 = vld [vmem:[%s1 + $0x1200] sm:$0xff]
    %v601 = vld [vmem:[%s1 + $0x1208] sm:$0xff]
    %v602 = vld [vmem:[%s1 + $0x1210] sm:$0xff]
    %v603 = vld [vmem:[%s1 + $0x1218] sm:$0xff]
    %v604 = vld [vmem:[%s1 + $0x1220] sm:$0xff]
    %v605 = vld [vmem:[%s1 + $0x1228] sm:$0xff]
    %v606 = vld [vmem:[%s1 + $0x1230] sm:$0xff]
    %v607 = vld [vmem:[%s1 + $0x1238] sm:$0xff]
    %v608 = vld [vmem:[%s1 + $0x1240] sm:$0xff]
    %v609 = vld [vmem:[%s1 + $0x1248] sm:$0xff]
    %v610 = vld [vmem:[%s1 + $0x1250] sm:$0xff]
    %v611 = vld [vmem:[%s1 + $0x1258] sm:$0xff]
    %v612 = vld [vmem:[%s1 + $0x1260] sm:$0xff]
    %v613 = vld [vmem:[%s1 + $0x1268] sm:$0xff]
    %v614 = vld [vmem:[%s1 + $0x1270] sm:$0xff]
    %v615 = vld [vmem:[%s1 + $0x1278] sm:$0xff]
    %v616 = vld [vmem:[%s1 + $0x1280] sm:$0xff]
    %v617 = vld [vmem:[%s1 + $0x1288] sm:$0xff]
    %v618 = vld [vmem:[%s1 + $0x1290] sm:$0xff]
    %v619 = vld [vmem:[%s1 + $0x1298] sm:$0xff]
    %v620 = vld [vmem:[%s1 + $0x12a0] sm:$0xff]
    %v621 = vld [vmem:[%s1 + $0x12a8] sm:$0xff]
    %v622 = vld [vmem:[%s1 + $0x12b0] sm:$0xff]
    %v623 = vld [vmem:[%s1 + $0x12b8] sm:$0xff]
    %v624 = vld [vmem:[%s1 + $0x12c0] sm:$0xff]
    %v625 = vld [vmem:[%s1 + $0x12c8] sm:$0xff]
    %v626 = vld [vmem:[%s1 + $0x12d0] sm:$0xff]
    %v627 = vld [vmem:[%s1 + $0x12d8] sm:$0xff]
    %v628 = vld [vmem:[%s1 + $0x12e0] sm:$0xff]
    %v629 = vld [vmem:[%s1 + $0x12e8] sm:$0xff]
    %v630 = vld [vmem:[%s1 + $0x12f0] sm:$0xff]
    %v631 = vld [vmem:[%s1 + $0x12f8] sm:$0xff]
    %v632 = vld [vmem:[%s1 + $0x1300] sm:$0xff]
    %v633 = vld [vmem:[%s1 + $0x1308] sm:$0xff]
    %v634 = vld [vmem:[%s1 + $0x1310] sm:$0xff]
    %v635 = vld [vmem:[%s1 + $0x1318] sm:$0xff]
    %v636 = vld [vmem:[%s1 + $0x1320] sm:$0xff]
    %v637 = vld [vmem:[%s1 + $0x1328] sm:$0xff]
    %v638 = vld [vmem:[%s1 + $0x1330] sm:$0xff]
    %v639 = vld [vmem:[%s1 + $0x1338] sm:$0xff]
    %v640 = vld [vmem:[%s1 + $0x1340] sm:$0xff]
    %v641 = vld [vmem:[%s1 + $0x1348] sm:$0xff]
    %v642 = vld [vmem:[%s1 + $0x1350] sm:$0xff]
    %v643 = vld [vmem:[%s1 + $0x1358] sm:$0xff]
    %v644 = vld [vmem:[%s1 + $0x1360] sm:$0xff]
    %v645 = vld [vmem:[%s1 + $0x1368] sm:$0xff]
    %v646 = vld [vmem:[%s1 + $0x1370] sm:$0xff]
    %v647 = vld [vmem:[%s1 + $0x1378] sm:$0xff]
    %v648 = vld [vmem:[%s1 + $0x1380] sm:$0xff]
    %v649 = vld [vmem:[%s1 + $0x1388] sm:$0xff]
    %v650 = vld [vmem:[%s1 + $0x1390] sm:$0xff]
    %v651 = vld [vmem:[%s1 + $0x1398] sm:$0xff]
    %v652 = vld [vmem:[%s1 + $0x13a0] sm:$0xff]
    %v653 = vld [vmem:[%s1 + $0x13a8] sm:$0xff]
    %v654 = vld [vmem:[%s1 + $0x13b0] sm:$0xff]
    %v655 = vld [vmem:[%s1 + $0x13b8] sm:$0xff]
    %v656 = vld [vmem:[%s1 + $0x13c0] sm:$0xff]
    %v657 = vld [vmem:[%s1 + $0x13c8] sm:$0xff]
    %v658 = vld [vmem:[%s1 + $0x13d0] sm:$0xff]
    %v659 = vld [vmem:[%s1 + $0x13d8] sm:$0xff]
    %v660 = vld [vmem:[%s1 + $0x13e0] sm:$0xff]
    %v661 = vld [vmem:[%s1 + $0x13e8] sm:$0xff]
    %v662 = vld [vmem:[%s1 + $0x13f0] sm:$0xff]
    %v663 = vld [vmem:[%s1 + $0x13f8] sm:$0xff]
    %v664 = vld [vmem:[%s1 + $0x1400] sm:$0xff]
    %v665 = vld [vmem:[%s1 + $0x1408] sm:$0xff]
    %v666 = vld [vmem:[%s1 + $0x1410] sm:$0xff]
    %v667 = vld [vmem:[%s1 + $0x1418] sm:$0xff]
    %v668 = vld [vmem:[%s1 + $0x1420] sm:$0xff]
    %v669 = vld [vmem:[%s1 + $0x1428] sm:$0xff]
    %v670 = vld [vmem:[%s1 + $0x1430] sm:$0xff]
    %v671 = vld [vmem:[%s1 + $0x1438] sm:$0xff]
    %v672 = vld [vmem:[%s1 + $0x1440] sm:$0xff]
    %v673 = vld [vmem:[%s1 + $0x1448] sm:$0xff]
    %v674 = vld [vmem:[%s1 + $0x1450] sm:$0xff]
    %v675 = vld [vmem:[%s1 + $0x1458] sm:$0xff]
    %v676 = vld [vmem:[%s1 + $0x1460] sm:$0xff]
    %v677 = vld [vmem:[%s1 + $0x1468] sm:$0xff]
    %v678 = vld [vmem:[%s1 + $0x1470] sm:$0xff]
    %v679 = vld [vmem:[%s1 + $0x1478] sm:$0xff]
    %v680 = vld [vmem:[%s1 + $0x1480] sm:$0xff]
    %v681 = vld [vmem:[%s1 + $0x1488] sm:$0xff]
    %v682 = vld [vmem:[%s1 + $0x1490] sm:$0xff]
    %v683 = vld [vmem:[%s1 + $0x1498] sm:$0xff]
    %v684 = vld [vmem:[%s1 + $0x14a0] sm:$0xff]
    %v685 = vld [vmem:[%s1 + $0x14a8] sm:$0xff]
    %v686 = vld [vmem:[%s1 + $0x14b0] sm:$0xff]
    %v687 = vld [vmem:[%s1 + $0x14b8] sm:$0xff]
    %v688 = vld [vmem:[%s1 + $0x14c0] sm:$0xff]
    %v689 = vld [vmem:[%s1 + $0x14c8] sm:$0xff]
    %v690 = vld [vmem:[%s1 + $0x14d0] sm:$0xff]
    %v691 = vld [vmem:[%s1 + $0x14d8] sm:$0xff]
    %v692 = vld [vmem:[%s1 + $0x14e0] sm:$0xff]
    %v693 = vld [vmem:[%s1 + $0x14e8] sm:$0xff]
    %v694 = vld [vmem:[%s1 + $0x14f0] sm:$0xff]
    %v695 = vld [vmem:[%s1 + $0x14f8] sm:$0xff]
    %v696 = vld [vmem:[%s1 + $0x1500] sm:$0xff]
    %v697 = vld [vmem:[%s1 + $0x1508] sm:$0xff]
    %v698 = vld [vmem:[%s1 + $0x1510] sm:$0xff]
    %v699 = vld [vmem:[%s1 + $0x1518] sm:$0xff]
    %v700 = vld [vmem:[%s1 + $0x1520] sm:$0xff]
    %v701 = vld [vmem:[%s1 + $0x1528] sm:$0xff]
    %v702 = vld [vmem:[%s1 + $0x1530] sm:$0xff]
    %v703 = vld [vmem:[%s1 + $0x1538] sm:$0xff]
    %v704 = vld [vmem:[%s1 + $0x1540] sm:$0xff]
    %v705 = vld [vmem:[%s1 + $0x1548] sm:$0xff]
    %v706 = vld [vmem:[%s1 + $0x1550] sm:$0xff]
    %v707 = vld [vmem:[%s1 + $0x1558] sm:$0xff]
    %v708 = vld [vmem:[%s1 + $0x1560] sm:$0xff]
    %v709 = vld [vmem:[%s1 + $0x1568] sm:$0xff]
    %v710 = vld [vmem:[%s1 + $0x1570] sm:$0xff]
    %v711 = vld [vmem:[%s1 + $0x1578] sm:$0xff]
    %v712 = vld [vmem:[%s1 + $0x1580] sm:$0xff]
    %v713 = vld [vmem:[%s1 + $0x1588] sm:$0xff]
    %v714 = vld [vmem:[%s1 + $0x1590] sm:$0xff]
    %v715 = vld [vmem:[%s1 + $0x1598] sm:$0xff]
    %v716 = vld [vmem:[%s1 + $0x15a0] sm:$0xff]
    %v717 = vld [vmem:[%s1 + $0x15a8] sm:$0xff]
    %v718 = vld [vmem:[%s1 + $0x15b0] sm:$0xff]
    %v719 = vld [vmem:[%s1 + $0x15b8] sm:$0xff]
    %v720 = vld [vmem:[%s1 + $0x15c0] sm:$0xff]
    %v721 = vld [vmem:[%s1 + $0x15c8] sm:$0xff]
    %v722 = vld [vmem:[%s1 + $0x15d0] sm:$0xff]
    %v723 = vld [vmem:[%s1 + $0x15d8] sm:$0xff]
    %v724 = vld [vmem:[%s1 + $0x15e0] sm:$0xff]
    %v725 = vld [vmem:[%s1 + $0x15e8] sm:$0xff]
    %v726 = vld [vmem:[%s1 + $0x15f0] sm:$0xff]
    %v727 = vld [vmem:[%s1 + $0x15f8] sm:$0xff]
    %v728 = vld [vmem:[%s1 + $0x1600] sm:$0xff]
    %v729 = vld [vmem:[%s1 + $0x1608] sm:$0xff]
    %v730 = vld [vmem:[%s1 + $0x1610] sm:$0xff]
    %v731 = vld [vmem:[%s1 + $0x1618] sm:$0xff]
    %v732 = vld [vmem:[%s1 + $0x1620] sm:$0xff]
    %v733 = vld [vmem:[%s1 + $0x1628] sm:$0xff]
    %v734 = vld [vmem:[%s1 + $0x1630] sm:$0xff]
    %v735 = vld [vmem:[%s1 + $0x1638] sm:$0xff]
    %v736 = vld [vmem:[%s1 + $0x1640] sm:$0xff]
    %v737 = vld [vmem:[%s1 + $0x1648] sm:$0xff]
    %v738 = vld [vmem:[%s1 + $0x1650] sm:$0xff]
    %v739 = vld [vmem:[%s1 + $0x1658] sm:$0xff]
    %v740 = vld [vmem:[%s1 + $0x1660] sm:$0xff]
    %v741 = vld [vmem:[%s1 + $0x1668] sm:$0xff]
    %v742 = vld [vmem:[%s1 + $0x1670] sm:$0xff]
    %v743 = vld [vmem:[%s1 + $0x1678] sm:$0xff]
    %v744 = vld [vmem:[%s1 + $0x1680] sm:$0xff]
    %v745 = vld [vmem:[%s1 + $0x1688] sm:$0xff]
    %v746 = vld [vmem:[%s1 + $0x1690] sm:$0xff]
    %v747 = vld [vmem:[%s1 + $0x1698] sm:$0xff]
    %v748 = vld [vmem:[%s1 + $0x16a0] sm:$0xff]
    %v749 = vld [vmem:[%s1 + $0x16a8] sm:$0xff]
    %v750 = vld [vmem:[%s1 + $0x16b0] sm:$0xff]
    %v751 = vld [vmem:[%s1 + $0x16b8] sm:$0xff]
    %v752 = vld [vmem:[%s1 + $0x16c0] sm:$0xff]
    %v753 = vld [vmem:[%s1 + $0x16c8] sm:$0xff]
    %v754 = vld [vmem:[%s1 + $0x16d0] sm:$0xff]
    %v755 = vld [vmem:[%s1 + $0x16d8] sm:$0xff]
    %v756 = vld [vmem:[%s1 + $0x16e0] sm:$0xff]
    %v757 = vld [vmem:[%s1 + $0x16e8] sm:$0xff]
    %v758 = vld [vmem:[%s1 + $0x16f0] sm:$0xff]
    %v759 = vld [vmem:[%s1 + $0x16f8] sm:$0xff]
    %v760 = vld [vmem:[%s1 + $0x1700] sm:$0xff]
    %v761 = vld [vmem:[%s1 + $0x1708] sm:$0xff]
    %v762 = vld [vmem:[%s1 + $0x1710] sm:$0xff]
    %v763 = vld [vmem:[%s1 + $0x1718] sm:$0xff]
    %v764 = vld [vmem:[%s1 + $0x1720] sm:$0xff]
    %v765 = vld [vmem:[%s1 + $0x1728] sm:$0xff]
    %v766 = vld [vmem:[%s1 + $0x1730] sm:$0xff]
    %v767 = vld [vmem:[%s1 + $0x1738] sm:$0xff]
    %v768 = vld [vmem:[%s1 + $0x1740] sm:$0xff]
    %v769 = vld [vmem:[%s1 + $0x1748] sm:$0xff]
    %v770 = vld [vmem:[%s1 + $0x1750] sm:$0xff]
    %v771 = vld [vmem:[%s1 + $0x1758] sm:$0xff]
    %v772 = vld [vmem:[%s1 + $0x1760] sm:$0xff]
    %v773 = vld [vmem:[%s1 + $0x1768] sm:$0xff]
    %v774 = vld [vmem:[%s1 + $0x1770] sm:$0xff]
    %v775 = vld [vmem:[%s1 + $0x1778] sm:$0xff]
    %v776 = vld [vmem:[%s1 + $0x1780] sm:$0xff]
    %v777 = vld [vmem:[%s1 + $0x1788] sm:$0xff]
    %v778 = vld [vmem:[%s1 + $0x1790] sm:$0xff]
    %v779 = vld [vmem:[%s1 + $0x1798] sm:$0xff]
    %v780 = vld [vmem:[%s1 + $0x17a0] sm:$0xff]
    %v781 = vld [vmem:[%s1 + $0x17a8] sm:$0xff]
    %v782 = vld [vmem:[%s1 + $0x17b0] sm:$0xff]
    %v783 = vld [vmem:[%s1 + $0x17b8] sm:$0xff]
    %v784 = vld [vmem:[%s1 + $0x17c0] sm:$0xff]
    %v785 = vld [vmem:[%s1 + $0x17c8] sm:$0xff]
    %v786 = vld [vmem:[%s1 + $0x17d0] sm:$0xff]
    %v787 = vld [vmem:[%s1 + $0x17d8] sm:$0xff]
    %v788 = vld [vmem:[%s1 + $0x17e0] sm:$0xff]
    %v789 = vld [vmem:[%s1 + $0x17e8] sm:$0xff]
    %v790 = vld [vmem:[%s1 + $0x17f0] sm:$0xff]
    %v791 = vld [vmem:[%s1 + $0x17f8] sm:$0xff]
    %v792 = vld [vmem:[%s1 + $0x1800] sm:$0xff]
    %v793 = vld [vmem:[%s1 + $0x1808] sm:$0xff]
    %v794 = vld [vmem:[%s1 + $0x1810] sm:$0xff]
    %v795 = vld [vmem:[%s1 + $0x1818] sm:$0xff]
    %v796 = vld [vmem:[%s1 + $0x1820] sm:$0xff]
    %v797 = vld [vmem:[%s1 + $0x1828] sm:$0xff]
    %v798 = vld [vmem:[%s1 + $0x1830] sm:$0xff]
    %v799 = vld [vmem:[%s1 + $0x1838] sm:$0xff]
    %v800 = vld [vmem:[%s1 + $0x1840] sm:$0xff]
    %v801 = vld [vmem:[%s1 + $0x1848] sm:$0xff]
    %v802 = vld [vmem:[%s1 + $0x1850] sm:$0xff]
    %v803 = vld [vmem:[%s1 + $0x1858] sm:$0xff]
    %v804 = vld [vmem:[%s1 + $0x1860] sm:$0xff]
    %v805 = vld [vmem:[%s1 + $0x1868] sm:$0xff]
    %v806 = vld [vmem:[%s1 + $0x1870] sm:$0xff]
    %v807 = vld [vmem:[%s1 + $0x1878] sm:$0xff]
    %v808 = vld [vmem:[%s1 + $0x1880] sm:$0xff]
    %v809 = vld [vmem:[%s1 + $0x1888] sm:$0xff]
    %v810 = vld [vmem:[%s1 + $0x1890] sm:$0xff]
    %v811 = vld [vmem:[%s1 + $0x1898] sm:$0xff]
    %v812 = vld [vmem:[%s1 + $0x18a0] sm:$0xff]
    %v813 = vld [vmem:[%s1 + $0x18a8] sm:$0xff]
    %v814 = vld [vmem:[%s1 + $0x18b0] sm:$0xff]
    %v815 = vld [vmem:[%s1 + $0x18b8] sm:$0xff]
    %v816 = vld [vmem:[%s1 + $0x18c0] sm:$0xff]
    %v817 = vld [vmem:[%s1 + $0x18c8] sm:$0xff]
    %v818 = vld [vmem:[%s1 + $0x18d0] sm:$0xff]
    %v819 = vld [vmem:[%s1 + $0x18d8] sm:$0xff]
    %v820 = vld [vmem:[%s1 + $0x18e0] sm:$0xff]
    %v821 = vld [vmem:[%s1 + $0x18e8] sm:$0xff]
    %v822 = vld [vmem:[%s1 + $0x18f0] sm:$0xff]
    %v823 = vld [vmem:[%s1 + $0x18f8] sm:$0xff]
    %v824 = vld [vmem:[%s1 + $0x1900] sm:$0xff]
    %v825 = vld [vmem:[%s1 + $0x1908] sm:$0xff]
    %v826 = vld [vmem:[%s1 + $0x1910] sm:$0xff]
    %v827 = vld [vmem:[%s1 + $0x1918] sm:$0xff]
    %v828 = vld [vmem:[%s1 + $0x1920] sm:$0xff]
    %v829 = vld [vmem:[%s1 + $0x1928] sm:$0xff]
    %v830 = vld [vmem:[%s1 + $0x1930] sm:$0xff]
    %v831 = vld [vmem:[%s1 + $0x1938] sm:$0xff]
    %v832 = vld [vmem:[%s1 + $0x1940] sm:$0xff]
    %v833 = vld [vmem:[%s1 + $0x1948] sm:$0xff]
    %v834 = vld [vmem:[%s1 + $0x1950] sm:$0xff]
    %v835 = vld [vmem:[%s1 + $0x1958] sm:$0xff]
    %v836 = vld [vmem:[%s1 + $0x1960] sm:$0xff]
    %v837 = vld [vmem:[%s1 + $0x1968] sm:$0xff]
    %v838 = vld [vmem:[%s1 + $0x1970] sm:$0xff]
    %v839 = vld [vmem:[%s1 + $0x1978] sm:$0xff]
    %v840 = vld [vmem:[%s1 + $0x1980] sm:$0xff]
    %v841 = vld [vmem:[%s1 + $0x1988] sm:$0xff]
    %v842 = vld [vmem:[%s1 + $0x1990] sm:$0xff]
    %v843 = vld [vmem:[%s1 + $0x1998] sm:$0xff]
    %v844 = vld [vmem:[%s1 + $0x19a0] sm:$0xff]
    %v845 = vld [vmem:[%s1 + $0x19a8] sm:$0xff]
    %v846 = vld [vmem:[%s1 + $0x19b0] sm:$0xff]
    %v847 = vld [vmem:[%s1 + $0x19b8] sm:$0xff]
    %v848 = vld [vmem:[%s1 + $0x19c0] sm:$0xff]
    %v849 = vld [vmem:[%s1 + $0x19c8] sm:$0xff]
    %v850 = vld [vmem:[%s1 + $0x19d0] sm:$0xff]
    %v851 = vld [vmem:[%s1 + $0x19d8] sm:$0xff]
    %v852 = vld [vmem:[%s1 + $0x19e0] sm:$0xff]
    %v853 = vld [vmem:[%s1 + $0x19e8] sm:$0xff]
    %v854 = vld [vmem:[%s1 + $0x19f0] sm:$0xff]
    %v855 = vld [vmem:[%s1 + $0x19f8] sm:$0xff]
    %v856 = vld [vmem:[%s1 + $0x1a00] sm:$0xff]
    %v857 = vld [vmem:[%s1 + $0x1a08] sm:$0xff]
    %v858 = vld [vmem:[%s1 + $0x1a10] sm:$0xff]
    %v859 = vld [vmem:[%s1 + $0x1a18] sm:$0xff]
    %v860 = vld [vmem:[%s1 + $0x1a20] sm:$0xff]
    %v861 = vld [vmem:[%s1 + $0x1a28] sm:$0xff]
    %v862 = vld [vmem:[%s1 + $0x1a30] sm:$0xff]
    %v863 = vld [vmem:[%s1 + $0x1a38] sm:$0xff]
    %v864 = vld [vmem:[%s1 + $0x1a40] sm:$0xff]
    %v865 = vld [vmem:[%s1 + $0x1a48] sm:$0xff]
    %v866 = vld [vmem:[%s1 + $0x1a50] sm:$0xff]
    %v867 = vld [vmem:[%s1 + $0x1a58] sm:$0xff]
    %v868 = vld [vmem:[%s1 + $0x1a60] sm:$0xff]
    %v869 = vld [vmem:[%s1 + $0x1a68] sm:$0xff]
    %v870 = vld [vmem:[%s1 + $0x1a70] sm:$0xff]
    %v871 = vld [vmem:[%s1 + $0x1a78] sm:$0xff]
    %v872 = vld [vmem:[%s1 + $0x1a80] sm:$0xff]
    %v873 = vld [vmem:[%s1 + $0x1a88] sm:$0xff]
    %v874 = vld [vmem:[%s1 + $0x1a90] sm:$0xff]
    %v875 = vld [vmem:[%s1 + $0x1a98] sm:$0xff]
    %v876 = vld [vmem:[%s1 + $0x1aa0] sm:$0xff]
    %v877 = vld [vmem:[%s1 + $0x1aa8] sm:$0xff]
    %v878 = vld [vmem:[%s1 + $0x1ab0] sm:$0xff]
    %v879 = vld [vmem:[%s1 + $0x1ab8] sm:$0xff]
    %v880 = vld [vmem:[%s1 + $0x1ac0] sm:$0xff]
    %v881 = vld [vmem:[%s1 + $0x1ac8] sm:$0xff]
    %v882 = vld [vmem:[%s1 + $0x1ad0] sm:$0xff]
    %v883 = vld [vmem:[%s1 + $0x1ad8] sm:$0xff]
    %v884 = vld [vmem:[%s1 + $0x1ae0] sm:$0xff]
    %v885 = vld [vmem:[%s1 + $0x1ae8] sm:$0xff]
    %v886 = vld [vmem:[%s1 + $0x1af0] sm:$0xff]
    %v887 = vld [vmem:[%s1 + $0x1af8] sm:$0xff]
    %v888 = vld [vmem:[%s1 + $0x1b00] sm:$0xff]
    %v889 = vld [vmem:[%s1 + $0x1b08] sm:$0xff]
    %v890 = vld [vmem:[%s1 + $0x1b10] sm:$0xff]
    %v891 = vld [vmem:[%s1 + $0x1b18] sm:$0xff]
    %v892 = vld [vmem:[%s1 + $0x1b20] sm:$0xff]
    %v893 = vld [vmem:[%s1 + $0x1b28] sm:$0xff]
    %v894 = vld [vmem:[%s1 + $0x1b30] sm:$0xff]
    %v895 = vld [vmem:[%s1 + $0x1b38] sm:$0xff]
    %v896 = vld [vmem:[%s1 + $0x1b40] sm:$0xff]
    %v897 = vld [vmem:[%s1 + $0x1b48] sm:$0xff]
    %v898 = vld [vmem:[%s1 + $0x1b50] sm:$0xff]
    %v899 = vld [vmem:[%s1 + $0x1b58] sm:$0xff]
    %v900 = vld [vmem:[%s1 + $0x1b60] sm:$0xff]
    %v901 = vld [vmem:[%s1 + $0x1b68] sm:$0xff]
    %v902 = vld [vmem:[%s1 + $0x1b70] sm:$0xff]
    %v903 = vld [vmem:[%s1 + $0x1b78] sm:$0xff]
    %v904 = vld [vmem:[%s1 + $0x1b80] sm:$0xff]
    %v905 = vld [vmem:[%s1 + $0x1b88] sm:$0xff]
    %v906 = vld [vmem:[%s1 + $0x1b90] sm:$0xff]
    %v907 = vld [vmem:[%s1 + $0x1b98] sm:$0xff]
    %v908 = vld [vmem:[%s1 + $0x1ba0] sm:$0xff]
    %v909 = vld [vmem:[%s1 + $0x1ba8] sm:$0xff]
    %v910 = vld [vmem:[%s1 + $0x1bb0] sm:$0xff]
    %v911 = vld [vmem:[%s1 + $0x1bb8] sm:$0xff]
    %v912 = vld [vmem:[%s1 + $0x1bc0] sm:$0xff]
    %v913 = vld [vmem:[%s1 + $0x1bc8] sm:$0xff]
    %v914 = vld [vmem:[%s1 + $0x1bd0] sm:$0xff]
    %v915 = vld [vmem:[%s1 + $0x1bd8] sm:$0xff]
    %v916 = vld [vmem:[%s1 + $0x1be0] sm:$0xff]
    %v917 = vld [vmem:[%s1 + $0x1be8] sm:$0xff]
    %v918 = vld [vmem:[%s1 + $0x1bf0] sm:$0xff]
    %v919 = vld [vmem:[%s1 + $0x1bf8] sm:$0xff]
    %v920 = vld [vmem:[%s1 + $0x1c00] sm:$0xff]
    %v921 = vld [vmem:[%s1 + $0x1c08] sm:$0xff]
    %v922 = vld [vmem:[%s1 + $0x1c10] sm:$0xff]
    %v923 = vld [vmem:[%s1 + $0x1c18] sm:$0xff]
    %v924 = vld [vmem:[%s1 + $0x1c20] sm:$0xff]
    %v925 = vld [vmem:[%s1 + $0x1c28] sm:$0xff]
    %v926 = vld [vmem:[%s1 + $0x1c30] sm:$0xff]
    %v927 = vld [vmem:[%s1 + $0x1c38] sm:$0xff]
    %v928 = vld [vmem:[%s1 + $0x1c40] sm:$0xff]
    %v929 = vld [vmem:[%s1 + $0x1c48] sm:$0xff]
    %v930 = vld [vmem:[%s1 + $0x1c50] sm:$0xff]
    %v931 = vld [vmem:[%s1 + $0x1c58] sm:$0xff]
    %v932 = vld [vmem:[%s1 + $0x1c60] sm:$0xff]
    %v933 = vld [vmem:[%s1 + $0x1c68] sm:$0xff]
    %v934 = vld [vmem:[%s1 + $0x1c70] sm:$0xff]
    %v935 = vld [vmem:[%s1 + $0x1c78] sm:$0xff]
    %v936 = vld [vmem:[%s1 + $0x1c80] sm:$0xff]
    %v937 = vld [vmem:[%s1 + $0x1c88] sm:$0xff]
    %v938 = vld [vmem:[%s1 + $0x1c90] sm:$0xff]
    %v939 = vld [vmem:[%s1 + $0x1c98] sm:$0xff]
    %v940 = vld [vmem:[%s1 + $0x1ca0] sm:$0xff]
    %v941 = vld [vmem:[%s1 + $0x1ca8] sm:$0xff]
    %v942 = vld [vmem:[%s1 + $0x1cb0] sm:$0xff]
    %v943 = vld [vmem:[%s1 + $0x1cb8] sm:$0xff]
    %v944 = vld [vmem:[%s1 + $0x1cc0] sm:$0xff]
    %v945 = vld [vmem:[%s1 + $0x1cc8] sm:$0xff]
    %v946 = vld [vmem:[%s1 + $0x1cd0] sm:$0xff]
    %v947 = vld [vmem:[%s1 + $0x1cd8] sm:$0xff]
    %v948 = vld [vmem:[%s1 + $0x1ce0] sm:$0xff]
    %v949 = vld [vmem:[%s1 + $0x1ce8] sm:$0xff]
    %v950 = vld [vmem:[%s1 + $0x1cf0] sm:$0xff]
    %v951 = vld [vmem:[%s1 + $0x1cf8] sm:$0xff]
    %v952 = vld [vmem:[%s1 + $0x1d00] sm:$0xff]
    %v953 = vld [vmem:[%s1 + $0x1d08] sm:$0xff]
    %v954 = vld [vmem:[%s1 + $0x1d10] sm:$0xff]
    %v955 = vld [vmem:[%s1 + $0x1d18] sm:$0xff]
    %v956 = vld [vmem:[%s1 + $0x1d20] sm:$0xff]
    %v957 = vld [vmem:[%s1 + $0x1d28] sm:$0xff]
    %v958 = vld [vmem:[%s1 + $0x1d30] sm:$0xff]
    %v959 = vld [vmem:[%s1 + $0x1d38] sm:$0xff]
    %v960 = vld [vmem:[%s1 + $0x1d40] sm:$0xff]
    %v961 = vld [vmem:[%s1 + $0x1d48] sm:$0xff]
    %v962 = vld [vmem:[%s1 + $0x1d50] sm:$0xff]
    %v963 = vld [vmem:[%s1 + $0x1d58] sm:$0xff]
    %v964 = vld [vmem:[%s1 + $0x1d60] sm:$0xff]
    %v965 = vld [vmem:[%s1 + $0x1d68] sm:$0xff]
    %v966 = vld [vmem:[%s1 + $0x1d70] sm:$0xff]
    %v967 = vld [vmem:[%s1 + $0x1d78] sm:$0xff]
    %v968 = vld [vmem:[%s1 + $0x1d80] sm:$0xff]
    %v969 = vld [vmem:[%s1 + $0x1d88] sm:$0xff]
    %v970 = vld [vmem:[%s1 + $0x1d90] sm:$0xff]
    %v971 = vld [vmem:[%s1 + $0x1d98] sm:$0xff]
    %v972 = vld [vmem:[%s1 + $0x1da0] sm:$0xff]
    %v973 = vld [vmem:[%s1 + $0x1da8] sm:$0xff]
    %v974 = vld [vmem:[%s1 + $0x1db0] sm:$0xff]
    %v975 = vld [vmem:[%s1 + $0x1db8] sm:$0xff]
    %v976 = vld [vmem:[%s1 + $0x1dc0] sm:$0xff]
    %v977 = vld [vmem:[%s1 + $0x1dc8] sm:$0xff]
    %v978 = vld [vmem:[%s1 + $0x1dd0] sm:$0xff]
    %v979 = vld [vmem:[%s1 + $0x1dd8] sm:$0xff]
    %v980 = vld [vmem:[%s1 + $0x1de0] sm:$0xff]
    %v981 = vld [vmem:[%s1 + $0x1de8] sm:$0xff]
    %v982 = vld [vmem:[%s1 + $0x1df0] sm:$0xff]
    %v983 = vld [vmem:[%s1 + $0x1df8] sm:$0xff]
    %v984 = vld [vmem:[%s1 + $0x1e00] sm:$0xff]
    %v985 = vld [vmem:[%s1 + $0x1e08] sm:$0xff]
    %v986 = vld [vmem:[%s1 + $0x1e10] sm:$0xff]
    %v987 = vld [vmem:[%s1 + $0x1e18] sm:$0xff]
    %v988 = vld [vmem:[%s1 + $0x1e20] sm:$0xff]
    %v989 = vld [vmem:[%s1 + $0x1e28] sm:$0xff]
    %v990 = vld [vmem:[%s1 + $0x1e30] sm:$0xff]
    %v991 = vld [vmem:[%s1 + $0x1e38] sm:$0xff]
    %v992 = vld [vmem:[%s1 + $0x1e40] sm:$0xff]
    %v993 = vld [vmem:[%s1 + $0x1e48] sm:$0xff]
    %v994 = vld [vmem:[%s1 + $0x1e50] sm:$0xff]
    %v995 = vld [vmem:[%s1 + $0x1e58] sm:$0xff]
    %v996 = vld [vmem:[%s1 + $0x1e60] sm:$0xff]
    %v997 = vld [vmem:[%s1 + $0x1e68] sm:$0xff]
    %v998 = vld [vmem:[%s1 + $0x1e70] sm:$0xff]
    %v999 = vld [vmem:[%s1 + $0x1e78] sm:$0xff]
    %v1000 = vld [vmem:[%s1 + $0x1e80] sm:$0xff]
    %v1001 = vld [vmem:[%s1 + $0x1e88] sm:$0xff]
    %v1002 = vld [vmem:[%s1 + $0x1e90] sm:$0xff]
    %v1003 = vld [vmem:[%s1 + $0x1e98] sm:$0xff]
    %v1004 = vld [vmem:[%s1 + $0x1ea0] sm:$0xff]
    %v1005 = vld [vmem:[%s1 + $0x1ea8] sm:$0xff]
    %v1006 = vld [vmem:[%s1 + $0x1eb0] sm:$0xff]
    %v1007 = vld [vmem:[%s1 + $0x1eb8] sm:$0xff]
    %v1008 = vld [vmem:[%s1 + $0x1ec0] sm:$0xff]
    %v1009 = vld [vmem:[%s1 + $0x1ec8] sm:$0xff]
    %v1010 = vld [vmem:[%s1 + $0x1ed0] sm:$0xff]
    %v1011 = vld [vmem:[%s1 + $0x1ed8] sm:$0xff]
    %v1012 = vld [vmem:[%s1 + $0x1ee0] sm:$0xff]
    %v1013 = vld [vmem:[%s1 + $0x1ee8] sm:$0xff]
    %v1014 = vld [vmem:[%s1 + $0x1ef0] sm:$0xff]
    %v1015 = vld [vmem:[%s1 + $0x1ef8] sm:$0xff]
    %v1016 = vld [vmem:[%s1 + $0x1f00] sm:$0xff]
    %v1017 = vld [vmem:[%s1 + $0x1f08] sm:$0xff]
    %v1018 = vld [vmem:[%s1 + $0x1f10] sm:$0xff]
    %v1019 = vld [vmem:[%s1 + $0x1f18] sm:$0xff]
    %v1020 = vld [vmem:[%s1 + $0x1f20] sm:$0xff]
    %v1021 = vld [vmem:[%s1 + $0x1f28] sm:$0xff]
    %v1022 = vld [vmem:[%s1 + $0x1f30] sm:$0xff]
    %v1023 = vld [vmem:[%s1 + $0x1f38] sm:$0xff]
    %v1024 = vld [vmem:[%s1 + $0x1f40] sm:$0xff]
    %v1025 = vld [vmem:[%s1 + $0x1f48] sm:$0xff]
    %v1026 = vld [vmem:[%s1 + $0x1f50] sm:$0xff]
    %v1027 = vld [vmem:[%s1 + $0x1f58] sm:$0xff]
    %v1028 = vld [vmem:[%s1 + $0x1f60] sm:$0xff]
    %v1029 = vld [vmem:[%s1 + $0x1f68] sm:$0xff]
    %v1030 = vld [vmem:[%s1 + $0x1f70] sm:$0xff]
    %v1031 = vld [vmem:[%s1 + $0x1f78] sm:$0xff]
    %v1032 = vld [vmem:[%s1 + $0x1f80] sm:$0xff]
    %v1033 = vld [vmem:[%s1 + $0x1f88] sm:$0xff]
    %v1034 = vld [vmem:[%s1 + $0x1f90] sm:$0xff]
    %v1035 = vld [vmem:[%s1 + $0x1f98] sm:$0xff]
    %v1036 = vld [vmem:[%s1 + $0x1fa0] sm:$0xff]
    %v1037 = vld [vmem:[%s1 + $0x1fa8] sm:$0xff]
    %v1038 = vld [vmem:[%s1 + $0x1fb0] sm:$0xff]
    %v1039 = vld [vmem:[%s1 + $0x1fb8] sm:$0xff]
    %v1040 = vld [vmem:[%s1 + $0x1fc0] sm:$0xff]
    %v1041 = vld [vmem:[%s1 + $0x1fc8] sm:$0xff]
    %v1042 = vld [vmem:[%s1 + $0x1fd0] sm:$0xff]
    %v1043 = vld [vmem:[%s1 + $0x1fd8] sm:$0xff]
    %v1044 = vld [vmem:[%s1 + $0x1fe0] sm:$0xff]
    %v1045 = vld [vmem:[%s1 + $0x1fe8] sm:$0xff]
    %v1046 = vld [vmem:[%s1 + $0x1ff0] sm:$0xff]
    %v1047 = vld [vmem:[%s1 + $0x1ff8] sm:$0xff]
    %s1048 = sld [smem:[#allocation2]]
    %v1049 = vstv %s1048
    %v1058 = vcombine.low %v16, %v20
    %v1059 = vcombine.high %v16, %v20
    %v1061 = vunpack.c.l.s4 1966171168
    %v1062 = vunpack.c.0.s8 %v1061
    %v1063 = vlaneseq
    %v1064 = vshrl.u32 %v1063, 7
    %v1065 = vsub.s32 %v1062, %v1064
    %v1066 = vrot.slane %v1058, %v1065
    %v1068 = vunpack.c.l.s4 1966171168
    %v1069 = vunpack.c.0.s8 %v1068
    %v1070 = vlaneseq
    %v1071 = vshrl.u32 %v1070, 7
    %v1072 = vsub.s32 %v1069, %v1071
    %v1073 = vrot.slane %v1059, %v1072
    %v1074 = vcombine.high %v1066, %v1066
    %v1075 = vcombine.high %v1073, %v1073
    %v1077 = vunpack.c.l.s4 1966171168
    %v1078 = vunpack.c.0.s8 %v1077
    %v1079 = vlaneseq
    %v1080 = vshrl.u32 %v1079, 7
    %v1081 = vsub.s32 %v1078, %v1080
    %v1082 = vrot.slane %v1066, %v1081
    %v1084 = vunpack.c.l.s4 1966171168
    %v1085 = vunpack.c.0.s8 %v1084
    %v1086 = vlaneseq
    %v1087 = vshrl.u32 %v1086, 7
    %v1088 = vsub.s32 %v1085, %v1087
    %v1089 = vrot.slane %v1073, %v1088
    %v1091 = vunpack.c.l.s4 1966171168
    %v1092 = vunpack.c.0.s8 %v1091
    %v1093 = vlaneseq
    %v1094 = vshrl.u32 %v1093, 7
    %v1095 = vsub.s32 %v1092, %v1094
    %v1096 = vrot.slane %v1074, %v1095
    %v1098 = vunpack.c.l.s4 1966171168
    %v1099 = vunpack.c.0.s8 %v1098
    %v1100 = vlaneseq
    %v1101 = vshrl.u32 %v1100, 7
    %v1102 = vsub.s32 %v1099, %v1101
    %v1103 = vrot.slane %v1075, %v1102
    %v1104 = vcombine.high %v1082, %v1082
    %v1105 = vcombine.high %v1089, %v1089
    %v1106 = vcombine.high %v1096, %v1096
    %v1107 = vcombine.high %v1103, %v1103
    %v1108 = vcombine.low %v17, %v21
    %v1109 = vcombine.high %v17, %v21
    %v1111 = vunpack.c.l.s4 1966171168
    %v1112 = vunpack.c.0.s8 %v1111
    %v1113 = vlaneseq
    %v1114 = vshrl.u32 %v1113, 7
    %v1115 = vsub.s32 %v1112, %v1114
    %v1116 = vrot.slane %v1108, %v1115
    %v1118 = vunpack.c.l.s4 1966171168
    %v1119 = vunpack.c.0.s8 %v1118
    %v1120 = vlaneseq
    %v1121 = vshrl.u32 %v1120, 7
    %v1122 = vsub.s32 %v1119, %v1121
    %v1123 = vrot.slane %v1109, %v1122
    %v1124 = vcombine.high %v1116, %v1116
    %v1125 = vcombine.high %v1123, %v1123
    %v1127 = vunpack.c.l.s4 1966171168
    %v1128 = vunpack.c.0.s8 %v1127
    %v1129 = vlaneseq
    %v1130 = vshrl.u32 %v1129, 7
    %v1131 = vsub.s32 %v1128, %v1130
    %v1132 = vrot.slane %v1116, %v1131
    %v1134 = vunpack.c.l.s4 1966171168
    %v1135 = vunpack.c.0.s8 %v1134
    %v1136 = vlaneseq
    %v1137 = vshrl.u32 %v1136, 7
    %v1138 = vsub.s32 %v1135, %v1137
    %v1139 = vrot.slane %v1123, %v1138
    %v1141 = vunpack.c.l.s4 1966171168
    %v1142 = vunpack.c.0.s8 %v1141
    %v1143 = vlaneseq
    %v1144 = vshrl.u32 %v1143, 7
    %v1145 = vsub.s32 %v1142, %v1144
    %v1146 = vrot.slane %v1124, %v1145
    %v1148 = vunpack.c.l.s4 1966171168
    %v1149 = vunpack.c.0.s8 %v1148
    %v1150 = vlaneseq
    %v1151 = vshrl.u32 %v1150, 7
    %v1152 = vsub.s32 %v1149, %v1151
    %v1153 = vrot.slane %v1125, %v1152
    %v1154 = vcombine.high %v1132, %v1132
    %v1155 = vcombine.high %v1139, %v1139
    %v1156 = vcombine.high %v1146, %v1146
    %v1157 = vcombine.high %v1153, %v1153
    %v1158 = vcombine.low %v18, %v22
    %v1159 = vcombine.high %v18, %v22
    %v1161 = vunpack.c.l.s4 1966171168
    %v1162 = vunpack.c.0.s8 %v1161
    %v1163 = vlaneseq
    %v1164 = vshrl.u32 %v1163, 7
    %v1165 = vsub.s32 %v1162, %v1164
    %v1166 = vrot.slane %v1158, %v1165
    %v1168 = vunpack.c.l.s4 1966171168
    %v1169 = vunpack.c.0.s8 %v1168
    %v1170 = vlaneseq
    %v1171 = vshrl.u32 %v1170, 7
    %v1172 = vsub.s32 %v1169, %v1171
    %v1173 = vrot.slane %v1159, %v1172
    %v1174 = vcombine.high %v1166, %v1166
    %v1175 = vcombine.high %v1173, %v1173
    %v1177 = vunpack.c.l.s4 1966171168
    %v1178 = vunpack.c.0.s8 %v1177
    %v1179 = vlaneseq
    %v1180 = vshrl.u32 %v1179, 7
    %v1181 = vsub.s32 %v1178, %v1180
    %v1182 = vrot.slane %v1166, %v1181
    %v1184 = vunpack.c.l.s4 1966171168
    %v1185 = vunpack.c.0.s8 %v1184
    %v1186 = vlaneseq
    %v1187 = vshrl.u32 %v1186, 7
    %v1188 = vsub.s32 %v1185, %v1187
    %v1189 = vrot.slane %v1173, %v1188
    %v1191 = vunpack.c.l.s4 1966171168
    %v1192 = vunpack.c.0.s8 %v1191
    %v1193 = vlaneseq
    %v1194 = vshrl.u32 %v1193, 7
    %v1195 = vsub.s32 %v1192, %v1194
    %v1196 = vrot.slane %v1174, %v1195
    %v1198 = vunpack.c.l.s4 1966171168
    %v1199 = vunpack.c.0.s8 %v1198
    %v1200 = vlaneseq
    %v1201 = vshrl.u32 %v1200, 7
    %v1202 = vsub.s32 %v1199, %v1201
    %v1203 = vrot.slane %v1175, %v1202
    %v1204 = vcombine.high %v1182, %v1182
    %v1205 = vcombine.high %v1189, %v1189
    %v1206 = vcombine.high %v1196, %v1196
    %v1207 = vcombine.high %v1203, %v1203
    %v1208 = vcombine.low %v19, %v23
    %v1209 = vcombine.high %v19, %v23
    %v1211 = vunpack.c.l.s4 1966171168
    %v1212 = vunpack.c.0.s8 %v1211
    %v1213 = vlaneseq
    %v1214 = vshrl.u32 %v1213, 7
    %v1215 = vsub.s32 %v1212, %v1214
    %v1216 = vrot.slane %v1208, %v1215
    %v1218 = vunpack.c.l.s4 1966171168
    %v1219 = vunpack.c.0.s8 %v1218
    %v1220 = vlaneseq
    %v1221 = vshrl.u32 %v1220, 7
    %v1222 = vsub.s32 %v1219, %v1221
    %v1223 = vrot.slane %v1209, %v1222
    %v1224 = vcombine.high %v1216, %v1216
    %v1225 = vcombine.high %v1223, %v1223
    %v1227 = vunpack.c.l.s4 1966171168
    %v1228 = vunpack.c.0.s8 %v1227
    %v1229 = vlaneseq
    %v1230 = vshrl.u32 %v1229, 7
    %v1231 = vsub.s32 %v1228, %v1230
    %v1232 = vrot.slane %v1216, %v1231
    %v1234 = vunpack.c.l.s4 1966171168
    %v1235 = vunpack.c.0.s8 %v1234
    %v1236 = vlaneseq
    %v1237 = vshrl.u32 %v1236, 7
    %v1238 = vsub.s32 %v1235, %v1237
    %v1239 = vrot.slane %v1223, %v1238
    %v1241 = vunpack.c.l.s4 1966171168
    %v1242 = vunpack.c.0.s8 %v1241
    %v1243 = vlaneseq
    %v1244 = vshrl.u32 %v1243, 7
    %v1245 = vsub.s32 %v1242, %v1244
    %v1246 = vrot.slane %v1224, %v1245
    %v1248 = vunpack.c.l.s4 1966171168
    %v1249 = vunpack.c.0.s8 %v1248
    %v1250 = vlaneseq
    %v1251 = vshrl.u32 %v1250, 7
    %v1252 = vsub.s32 %v1249, %v1251
    %v1253 = vrot.slane %v1225, %v1252
    %v1254 = vcombine.high %v1232, %v1232
    %v1255 = vcombine.high %v1239, %v1239
    %v1256 = vcombine.high %v1246, %v1246
    %v1257 = vcombine.high %v1253, %v1253
    %1290 = vmatprep.subr.mxu0 %v25
    %1291 = vmatpush1.msra.mxu0 %v24
    %1292 = vmatprep.subr.mxu0 %v27
    %1293 = vmatpush1.msra.mxu0 %v26
    %1294 = vmatprep.subr.mxu0 %v29
    %1295 = vmatpush1.msra.mxu0 %v28
    %1296 = vmatprep.subr.mxu0 %v31
    %1297 = vmatpush1.msra.mxu0 %v30
    %1298 = vmatprep.subr.mxu0 %v33
    %1299 = vmatpush1.msra.mxu0 %v32
    %1300 = vmatprep.subr.mxu0 %v35
    %1301 = vmatpush1.msra.mxu0 %v34
    %1302 = vmatprep.subr.mxu0 %v37
    %1303 = vmatpush1.msra.mxu0 %v36
    %1304 = vmatprep.subr.mxu0 %v39
    %1305 = vmatpush1.msra.mxu0 %v38
    %1306 = vmatprep.subr.mxu0 %v41
    %1307 = vmatpush1.msra.mxu0 %v40
    %1308 = vmatprep.subr.mxu0 %v43
    %1309 = vmatpush1.msra.mxu0 %v42
    %1310 = vmatprep.subr.mxu0 %v45
    %1311 = vmatpush1.msra.mxu0 %v44
    %1312 = vmatprep.subr.mxu0 %v47
    %1313 = vmatpush1.msra.mxu0 %v46
    %1314 = vmatprep.subr.mxu0 %v49
    %1315 = vmatpush1.msra.mxu0 %v48
    %1316 = vmatprep.subr.mxu0 %v51
    %1317 = vmatpush1.msra.mxu0 %v50
    %1318 = vmatprep.subr.mxu0 %v53
    %1319 = vmatpush1.msra.mxu0 %v52
    %1320 = vmatprep.subr.mxu0 %v55
    %1321 = vmatpush1.msra.mxu0 %v54
    %1322 = vmatprep.subr.mxu0 %v57
    %1323 = vmatpush1.msra.mxu0 %v56
    %1324 = vmatprep.subr.mxu0 %v59
    %1325 = vmatpush1.msra.mxu0 %v58
    %1326 = vmatprep.subr.mxu0 %v61
    %1327 = vmatpush1.msra.mxu0 %v60
    %1328 = vmatprep.subr.mxu0 %v63
    %1329 = vmatpush1.msra.mxu0 %v62
    %1330 = vmatprep.subr.mxu0 %v65
    %1331 = vmatpush1.msra.mxu0 %v64
    %1332 = vmatprep.subr.mxu0 %v67
    %1333 = vmatpush1.msra.mxu0 %v66
    %1334 = vmatprep.subr.mxu0 %v69
    %1335 = vmatpush1.msra.mxu0 %v68
    %1336 = vmatprep.subr.mxu0 %v71
    %1337 = vmatpush1.msra.mxu0 %v70
    %1338 = vmatprep.subr.mxu0 %v73
    %1339 = vmatpush1.msra.mxu0 %v72
    %1340 = vmatprep.subr.mxu0 %v75
    %1341 = vmatpush1.msra.mxu0 %v74
    %1342 = vmatprep.subr.mxu0 %v77
    %1343 = vmatpush1.msra.mxu0 %v76
    %1344 = vmatprep.subr.mxu0 %v79
    %1345 = vmatpush1.msra.mxu0 %v78
    %1346 = vmatprep.subr.mxu0 %v81
    %1347 = vmatpush1.msra.mxu0 %v80
    %1348 = vmatprep.subr.mxu0 %v83
    %1349 = vmatpush1.msra.mxu0 %v82
    %1350 = vmatprep.subr.mxu0 %v85
    %1351 = vmatpush1.msra.mxu0 %v84
    %1352 = vmatprep.subr.mxu0 %v87
    %1353 = vmatpush1.msra.mxu0 %v86
    %1354 = vmatprep.mubr.f32.mxu0 %v1096
    %1355 = vmatmul.mubr.f32.gmra.mrb[0].mxu0 %v1082
    %v1356 = vpop.f32.mrb[0].mxu0
    %v1357 = vadd.f32 %v1049, %v1356
    %v1358 = vpop.f32.mrb[0].mxu0
    %v1359 = vadd.f32 %v1049, %v1358
    %1360 = vdwg.mxu0
    %1361 = vmatprep.subr.mxu0 %v89
    %1362 = vmatpush1.msra.mxu0 %v88
    %1363 = vmatprep.subr.mxu0 %v91
    %1364 = vmatpush1.msra.mxu0 %v90
    %1365 = vmatprep.subr.mxu0 %v93
    %1366 = vmatpush1.msra.mxu0 %v92
    %1367 = vmatprep.subr.mxu0 %v95
    %1368 = vmatpush1.msra.mxu0 %v94
    %1369 = vmatprep.subr.mxu0 %v97
    %1370 = vmatpush1.msra.mxu0 %v96
    %1371 = vmatprep.subr.mxu0 %v99
    %1372 = vmatpush1.msra.mxu0 %v98
    %1373 = vmatprep.subr.mxu0 %v101
    %1374 = vmatpush1.msra.mxu0 %v100
    %1375 = vmatprep.subr.mxu0 %v103
    %1376 = vmatpush1.msra.mxu0 %v102
    %1377 = vmatprep.subr.mxu0 %v105
    %1378 = vmatpush1.msra.mxu0 %v104
    %1379 = vmatprep.subr.mxu0 %v107
    %1380 = vmatpush1.msra.mxu0 %v106
    %1381 = vmatprep.subr.mxu0 %v109
    %1382 = vmatpush1.msra.mxu0 %v108
    %1383 = vmatprep.subr.mxu0 %v111
    %1384 = vmatpush1.msra.mxu0 %v110
    %1385 = vmatprep.subr.mxu0 %v113
    %1386 = vmatpush1.msra.mxu0 %v112
    %1387 = vmatprep.subr.mxu0 %v115
    %1388 = vmatpush1.msra.mxu0 %v114
    %1389 = vmatprep.subr.mxu0 %v117
    %1390 = vmatpush1.msra.mxu0 %v116
    %1391 = vmatprep.subr.mxu0 %v119
    %1392 = vmatpush1.msra.mxu0 %v118
    %1393 = vmatprep.subr.mxu0 %v121
    %1394 = vmatpush1.msra.mxu0 %v120
    %1395 = vmatprep.subr.mxu0 %v123
    %1396 = vmatpush1.msra.mxu0 %v122
    %1397 = vmatprep.subr.mxu0 %v125
    %1398 = vmatpush1.msra.mxu0 %v124
    %1399 = vmatprep.subr.mxu0 %v127
    %1400 = vmatpush1.msra.mxu0 %v126
    %1401 = vmatprep.subr.mxu0 %v129
    %1402 = vmatpush1.msra.mxu0 %v128
    %1403 = vmatprep.subr.mxu0 %v131
    %1404 = vmatpush1.msra.mxu0 %v130
    %1405 = vmatprep.subr.mxu0 %v133
    %1406 = vmatpush1.msra.mxu0 %v132
    %1407 = vmatprep.subr.mxu0 %v135
    %1408 = vmatpush1.msra.mxu0 %v134
    %1409 = vmatprep.subr.mxu0 %v137
    %1410 = vmatpush1.msra.mxu0 %v136
    %1411 = vmatprep.subr.mxu0 %v139
    %1412 = vmatpush1.msra.mxu0 %v138
    %1413 = vmatprep.subr.mxu0 %v141
    %1414 = vmatpush1.msra.mxu0 %v140
    %1415 = vmatprep.subr.mxu0 %v143
    %1416 = vmatpush1.msra.mxu0 %v142
    %1417 = vmatprep.subr.mxu0 %v145
    %1418 = vmatpush1.msra.mxu0 %v144
    %1419 = vmatprep.subr.mxu0 %v147
    %1420 = vmatpush1.msra.mxu0 %v146
    %1421 = vmatprep.subr.mxu0 %v149
    %1422 = vmatpush1.msra.mxu0 %v148
    %1423 = vmatprep.subr.mxu0 %v151
    %1424 = vmatpush1.msra.mxu0 %v150
    %1425 = vmatprep.mubr.f32.mxu0 %v1106
    %1426 = vmatmul.mubr.f32.gmra.mrb[0].mxu0 %v1104
    %v1427 = vpop.f32.mrb[0].mxu0
    %v1428 = vadd.f32 %v1357, %v1427
    %v1429 = vpop.f32.mrb[0].mxu0
    %v1430 = vadd.f32 %v1359, %v1429
    %1431 = vdwg.mxu0
    %1432 = vmatprep.subr.mxu0 %v153
    %1433 = vmatpush1.msra.mxu0 %v152
    %1434 = vmatprep.subr.mxu0 %v155
    %1435 = vmatpush1.msra.mxu0 %v154
    %1436 = vmatprep.subr.mxu0 %v157
    %1437 = vmatpush1.msra.mxu0 %v156
    %1438 = vmatprep.subr.mxu0 %v159
    %1439 = vmatpush1.msra.mxu0 %v158
    %1440 = vmatprep.subr.mxu0 %v161
    %1441 = vmatpush1.msra.mxu0 %v160
    %1442 = vmatprep.subr.mxu0 %v163
    %1443 = vmatpush1.msra.mxu0 %v162
    %1444 = vmatprep.subr.mxu0 %v165
    %1445 = vmatpush1.msra.mxu0 %v164
    %1446 = vmatprep.subr.mxu0 %v167
    %1447 = vmatpush1.msra.mxu0 %v166
    %1448 = vmatprep.subr.mxu0 %v169
    %1449 = vmatpush1.msra.mxu0 %v168
    %1450 = vmatprep.subr.mxu0 %v171
    %1451 = vmatpush1.msra.mxu0 %v170
    %1452 = vmatprep.subr.mxu0 %v173
    %1453 = vmatpush1.msra.mxu0 %v172
    %1454 = vmatprep.subr.mxu0 %v175
    %1455 = vmatpush1.msra.mxu0 %v174
    %1456 = vmatprep.subr.mxu0 %v177
    %1457 = vmatpush1.msra.mxu0 %v176
    %1458 = vmatprep.subr.mxu0 %v179
    %1459 = vmatpush1.msra.mxu0 %v178
    %1460 = vmatprep.subr.mxu0 %v181
    %1461 = vmatpush1.msra.mxu0 %v180
    %1462 = vmatprep.subr.mxu0 %v183
    %1463 = vmatpush1.msra.mxu0 %v182
    %1464 = vmatprep.subr.mxu0 %v185
    %1465 = vmatpush1.msra.mxu0 %v184
    %1466 = vmatprep.subr.mxu0 %v187
    %1467 = vmatpush1.msra.mxu0 %v186
    %1468 = vmatprep.subr.mxu0 %v189
    %1469 = vmatpush1.msra.mxu0 %v188
    %1470 = vmatprep.subr.mxu0 %v191
    %1471 = vmatpush1.msra.mxu0 %v190
    %1472 = vmatprep.subr.mxu0 %v193
    %1473 = vmatpush1.msra.mxu0 %v192
    %1474 = vmatprep.subr.mxu0 %v195
    %1475 = vmatpush1.msra.mxu0 %v194
    %1476 = vmatprep.subr.mxu0 %v197
    %1477 = vmatpush1.msra.mxu0 %v196
    %1478 = vmatprep.subr.mxu0 %v199
    %1479 = vmatpush1.msra.mxu0 %v198
    %1480 = vmatprep.subr.mxu0 %v201
    %1481 = vmatpush1.msra.mxu0 %v200
    %1482 = vmatprep.subr.mxu0 %v203
    %1483 = vmatpush1.msra.mxu0 %v202
    %1484 = vmatprep.subr.mxu0 %v205
    %1485 = vmatpush1.msra.mxu0 %v204
    %1486 = vmatprep.subr.mxu0 %v207
    %1487 = vmatpush1.msra.mxu0 %v206
    %1488 = vmatprep.subr.mxu0 %v209
    %1489 = vmatpush1.msra.mxu0 %v208
    %1490 = vmatprep.subr.mxu0 %v211
    %1491 = vmatpush1.msra.mxu0 %v210
    %1492 = vmatprep.subr.mxu0 %v213
    %1493 = vmatpush1.msra.mxu0 %v212
    %1494 = vmatprep.subr.mxu0 %v215
    %1495 = vmatpush1.msra.mxu0 %v214
    %1496 = vmatprep.mubr.f32.mxu0 %v1103
    %1497 = vmatmul.mubr.f32.gmra.mrb[0].mxu0 %v1089
    %v1498 = vpop.f32.mrb[0].mxu0
    %v1499 = vadd.f32 %v1428, %v1498
    %v1500 = vpop.f32.mrb[0].mxu0
    %v1501 = vadd.f32 %v1430, %v1500
    %1502 = vdwg.mxu0
    %1503 = vmatprep.subr.mxu0 %v217
    %1504 = vmatpush1.msra.mxu0 %v216
    %1505 = vmatprep.subr.mxu0 %v219
    %1506 = vmatpush1.msra.mxu0 %v218
    %1507 = vmatprep.subr.mxu0 %v221
    %1508 = vmatpush1.msra.mxu0 %v220
    %1509 = vmatprep.subr.mxu0 %v223
    %1510 = vmatpush1.msra.mxu0 %v222
    %1511 = vmatprep.subr.mxu0 %v225
    %1512 = vmatpush1.msra.mxu0 %v224
    %1513 = vmatprep.subr.mxu0 %v227
    %1514 = vmatpush1.msra.mxu0 %v226
    %1515 = vmatprep.subr.mxu0 %v229
    %1516 = vmatpush1.msra.mxu0 %v228
    %1517 = vmatprep.subr.mxu0 %v231
    %1518 = vmatpush1.msra.mxu0 %v230
    %1519 = vmatprep.subr.mxu0 %v233
    %1520 = vmatpush1.msra.mxu0 %v232
    %1521 = vmatprep.subr.mxu0 %v235
    %1522 = vmatpush1.msra.mxu0 %v234
    %1523 = vmatprep.subr.mxu0 %v237
    %1524 = vmatpush1.msra.mxu0 %v236
    %1525 = vmatprep.subr.mxu0 %v239
    %1526 = vmatpush1.msra.mxu0 %v238
    %1527 = vmatprep.subr.mxu0 %v241
    %1528 = vmatpush1.msra.mxu0 %v240
    %1529 = vmatprep.subr.mxu0 %v243
    %1530 = vmatpush1.msra.mxu0 %v242
    %1531 = vmatprep.subr.mxu0 %v245
    %1532 = vmatpush1.msra.mxu0 %v244
    %1533 = vmatprep.subr.mxu0 %v247
    %1534 = vmatpush1.msra.mxu0 %v246
    %1535 = vmatprep.subr.mxu0 %v249
    %1536 = vmatpush1.msra.mxu0 %v248
    %1537 = vmatprep.subr.mxu0 %v251
    %1538 = vmatpush1.msra.mxu0 %v250
    %1539 = vmatprep.subr.mxu0 %v253
    %1540 = vmatpush1.msra.mxu0 %v252
    %1541 = vmatprep.subr.mxu0 %v255
    %1542 = vmatpush1.msra.mxu0 %v254
    %1543 = vmatprep.subr.mxu0 %v257
    %1544 = vmatpush1.msra.mxu0 %v256
    %1545 = vmatprep.subr.mxu0 %v259
    %1546 = vmatpush1.msra.mxu0 %v258
    %1547 = vmatprep.subr.mxu0 %v261
    %1548 = vmatpush1.msra.mxu0 %v260
    %1549 = vmatprep.subr.mxu0 %v263
    %1550 = vmatpush1.msra.mxu0 %v262
    %1551 = vmatprep.subr.mxu0 %v265
    %1552 = vmatpush1.msra.mxu0 %v264
    %1553 = vmatprep.subr.mxu0 %v267
    %1554 = vmatpush1.msra.mxu0 %v266
    %1555 = vmatprep.subr.mxu0 %v269
    %1556 = vmatpush1.msra.mxu0 %v268
    %1557 = vmatprep.subr.mxu0 %v271
    %1558 = vmatpush1.msra.mxu0 %v270
    %1559 = vmatprep.subr.mxu0 %v273
    %1560 = vmatpush1.msra.mxu0 %v272
    %1561 = vmatprep.subr.mxu0 %v275
    %1562 = vmatpush1.msra.mxu0 %v274
    %1563 = vmatprep.subr.mxu0 %v277
    %1564 = vmatpush1.msra.mxu0 %v276
    %1565 = vmatprep.subr.mxu0 %v279
    %1566 = vmatpush1.msra.mxu0 %v278
    %1567 = vmatprep.mubr.f32.mxu0 %v1107
    %1568 = vmatmul.mubr.f32.gmra.mrb[0].mxu0 %v1105
    %v1569 = vpop.f32.mrb[0].mxu0
    %v1570 = vadd.f32 %v1499, %v1569
    %v1571 = vpop.f32.mrb[0].mxu0
    %v1572 = vadd.f32 %v1501, %v1571
    %1573 = vdwg.mxu0
    %1574 = vmatprep.subr.mxu0 %v281
    %1575 = vmatpush1.msra.mxu0 %v280
    %1576 = vmatprep.subr.mxu0 %v283
    %1577 = vmatpush1.msra.mxu0 %v282
    %1578 = vmatprep.subr.mxu0 %v285
    %1579 = vmatpush1.msra.mxu0 %v284
    %1580 = vmatprep.subr.mxu0 %v287
    %1581 = vmatpush1.msra.mxu0 %v286
    %1582 = vmatprep.subr.mxu0 %v289
    %1583 = vmatpush1.msra.mxu0 %v288
    %1584 = vmatprep.subr.mxu0 %v291
    %1585 = vmatpush1.msra.mxu0 %v290
    %1586 = vmatprep.subr.mxu0 %v293
    %1587 = vmatpush1.msra.mxu0 %v292
    %1588 = vmatprep.subr.mxu0 %v295
    %1589 = vmatpush1.msra.mxu0 %v294
    %1590 = vmatprep.subr.mxu0 %v297
    %1591 = vmatpush1.msra.mxu0 %v296
    %1592 = vmatprep.subr.mxu0 %v299
    %1593 = vmatpush1.msra.mxu0 %v298
    %1594 = vmatprep.subr.mxu0 %v301
    %1595 = vmatpush1.msra.mxu0 %v300
    %1596 = vmatprep.subr.mxu0 %v303
    %1597 = vmatpush1.msra.mxu0 %v302
    %1598 = vmatprep.subr.mxu0 %v305
    %1599 = vmatpush1.msra.mxu0 %v304
    %1600 = vmatprep.subr.mxu0 %v307
    %1601 = vmatpush1.msra.mxu0 %v306
    %1602 = vmatprep.subr.mxu0 %v309
    %1603 = vmatpush1.msra.mxu0 %v308
    %1604 = vmatprep.subr.mxu0 %v311
    %1605 = vmatpush1.msra.mxu0 %v310
    %1606 = vmatprep.subr.mxu0 %v313
    %1607 = vmatpush1.msra.mxu0 %v312
    %1608 = vmatprep.subr.mxu0 %v315
    %1609 = vmatpush1.msra.mxu0 %v314
    %1610 = vmatprep.subr.mxu0 %v317
    %1611 = vmatpush1.msra.mxu0 %v316
    %1612 = vmatprep.subr.mxu0 %v319
    %1613 = vmatpush1.msra.mxu0 %v318
    %1614 = vmatprep.subr.mxu0 %v321
    %1615 = vmatpush1.msra.mxu0 %v320
    %1616 = vmatprep.subr.mxu0 %v323
    %1617 = vmatpush1.msra.mxu0 %v322
    %1618 = vmatprep.subr.mxu0 %v325
    %1619 = vmatpush1.msra.mxu0 %v324
    %1620 = vmatprep.subr.mxu0 %v327
    %1621 = vmatpush1.msra.mxu0 %v326
    %1622 = vmatprep.subr.mxu0 %v329
    %1623 = vmatpush1.msra.mxu0 %v328
    %1624 = vmatprep.subr.mxu0 %v331
    %1625 = vmatpush1.msra.mxu0 %v330
    %1626 = vmatprep.subr.mxu0 %v333
    %1627 = vmatpush1.msra.mxu0 %v332
    %1628 = vmatprep.subr.mxu0 %v335
    %1629 = vmatpush1.msra.mxu0 %v334
    %1630 = vmatprep.subr.mxu0 %v337
    %1631 = vmatpush1.msra.mxu0 %v336
    %1632 = vmatprep.subr.mxu0 %v339
    %1633 = vmatpush1.msra.mxu0 %v338
    %1634 = vmatprep.subr.mxu0 %v341
    %1635 = vmatpush1.msra.mxu0 %v340
    %1636 = vmatprep.subr.mxu0 %v343
    %1637 = vmatpush1.msra.mxu0 %v342
    %1638 = vmatprep.mubr.f32.mxu0 %v1146
    %1639 = vmatmul.mubr.f32.gmra.mrb[0].mxu0 %v1132
    %v1640 = vpop.f32.mrb[0].mxu0
    %v1641 = vadd.f32 %v1570, %v1640
    %v1642 = vpop.f32.mrb[0].mxu0
    %v1643 = vadd.f32 %v1572, %v1642
    %1644 = vdwg.mxu0
    %1645 = vmatprep.subr.mxu0 %v345
    %1646 = vmatpush1.msra.mxu0 %v344
    %1647 = vmatprep.subr.mxu0 %v347
    %1648 = vmatpush1.msra.mxu0 %v346
    %1649 = vmatprep.subr.mxu0 %v349
    %1650 = vmatpush1.msra.mxu0 %v348
    %1651 = vmatprep.subr.mxu0 %v351
    %1652 = vmatpush1.msra.mxu0 %v350
    %1653 = vmatprep.subr.mxu0 %v353
    %1654 = vmatpush1.msra.mxu0 %v352
    %1655 = vmatprep.subr.mxu0 %v355
    %1656 = vmatpush1.msra.mxu0 %v354
    %1657 = vmatprep.subr.mxu0 %v357
    %1658 = vmatpush1.msra.mxu0 %v356
    %1659 = vmatprep.subr.mxu0 %v359
    %1660 = vmatpush1.msra.mxu0 %v358
    %1661 = vmatprep.subr.mxu0 %v361
    %1662 = vmatpush1.msra.mxu0 %v360
    %1663 = vmatprep.subr.mxu0 %v363
    %1664 = vmatpush1.msra.mxu0 %v362
    %1665 = vmatprep.subr.mxu0 %v365
    %1666 = vmatpush1.msra.mxu0 %v364
    %1667 = vmatprep.subr.mxu0 %v367
    %1668 = vmatpush1.msra.mxu0 %v366
    %1669 = vmatprep.subr.mxu0 %v369
    %1670 = vmatpush1.msra.mxu0 %v368
    %1671 = vmatprep.subr.mxu0 %v371
    %1672 = vmatpush1.msra.mxu0 %v370
    %1673 = vmatprep.subr.mxu0 %v373
    %1674 = vmatpush1.msra.mxu0 %v372
    %1675 = vmatprep.subr.mxu0 %v375
    %1676 = vmatpush1.msra.mxu0 %v374
    %1677 = vmatprep.subr.mxu0 %v377
    %1678 = vmatpush1.msra.mxu0 %v376
    %1679 = vmatprep.subr.mxu0 %v379
    %1680 = vmatpush1.msra.mxu0 %v378
    %1681 = vmatprep.subr.mxu0 %v381
    %1682 = vmatpush1.msra.mxu0 %v380
    %1683 = vmatprep.subr.mxu0 %v383
    %1684 = vmatpush1.msra.mxu0 %v382
    %1685 = vmatprep.subr.mxu0 %v385
    %1686 = vmatpush1.msra.mxu0 %v384
    %1687 = vmatprep.subr.mxu0 %v387
    %1688 = vmatpush1.msra.mxu0 %v386
    %1689 = vmatprep.subr.mxu0 %v389
    %1690 = vmatpush1.msra.mxu0 %v388
    %1691 = vmatprep.subr.mxu0 %v391
    %1692 = vmatpush1.msra.mxu0 %v390
    %1693 = vmatprep.subr.mxu0 %v393
    %1694 = vmatpush1.msra.mxu0 %v392
    %1695 = vmatprep.subr.mxu0 %v395
    %1696 = vmatpush1.msra.mxu0 %v394
    %1697 = vmatprep.subr.mxu0 %v397
    %1698 = vmatpush1.msra.mxu0 %v396
    %1699 = vmatprep.subr.mxu0 %v399
    %1700 = vmatpush1.msra.mxu0 %v398
    %1701 = vmatprep.subr.mxu0 %v401
    %1702 = vmatpush1.msra.mxu0 %v400
    %1703 = vmatprep.subr.mxu0 %v403
    %1704 = vmatpush1.msra.mxu0 %v402
    %1705 = vmatprep.subr.mxu0 %v405
    %1706 = vmatpush1.msra.mxu0 %v404
    %1707 = vmatprep.subr.mxu0 %v407
    %1708 = vmatpush1.msra.mxu0 %v406
    %1709 = vmatprep.mubr.f32.mxu0 %v1156
    %1710 = vmatmul.mubr.f32.gmra.mrb[0].mxu0 %v1154
    %v1711 = vpop.f32.mrb[0].mxu0
    %v1712 = vadd.f32 %v1641, %v1711
    %v1713 = vpop.f32.mrb[0].mxu0
    %v1714 = vadd.f32 %v1643, %v1713
    %1715 = vdwg.mxu0
    %1716 = vmatprep.subr.mxu0 %v409
    %1717 = vmatpush1.msra.mxu0 %v408
    %1718 = vmatprep.subr.mxu0 %v411
    %1719 = vmatpush1.msra.mxu0 %v410
    %1720 = vmatprep.subr.mxu0 %v413
    %1721 = vmatpush1.msra.mxu0 %v412
    %1722 = vmatprep.subr.mxu0 %v415
    %1723 = vmatpush1.msra.mxu0 %v414
    %1724 = vmatprep.subr.mxu0 %v417
    %1725 = vmatpush1.msra.mxu0 %v416
    %1726 = vmatprep.subr.mxu0 %v419
    %1727 = vmatpush1.msra.mxu0 %v418
    %1728 = vmatprep.subr.mxu0 %v421
    %1729 = vmatpush1.msra.mxu0 %v420
    %1730 = vmatprep.subr.mxu0 %v423
    %1731 = vmatpush1.msra.mxu0 %v422
    %1732 = vmatprep.subr.mxu0 %v425
    %1733 = vmatpush1.msra.mxu0 %v424
    %1734 = vmatprep.subr.mxu0 %v427
    %1735 = vmatpush1.msra.mxu0 %v426
    %1736 = vmatprep.subr.mxu0 %v429
    %1737 = vmatpush1.msra.mxu0 %v428
    %1738 = vmatprep.subr.mxu0 %v431
    %1739 = vmatpush1.msra.mxu0 %v430
    %1740 = vmatprep.subr.mxu0 %v433
    %1741 = vmatpush1.msra.mxu0 %v432
    %1742 = vmatprep.subr.mxu0 %v435
    %1743 = vmatpush1.msra.mxu0 %v434
    %1744 = vmatprep.subr.mxu0 %v437
    %1745 = vmatpush1.msra.mxu0 %v436
    %1746 = vmatprep.subr.mxu0 %v439
    %1747 = vmatpush1.msra.mxu0 %v438
    %1748 = vmatprep.subr.mxu0 %v441
    %1749 = vmatpush1.msra.mxu0 %v440
    %1750 = vmatprep.subr.mxu0 %v443
    %1751 = vmatpush1.msra.mxu0 %v442
    %1752 = vmatprep.subr.mxu0 %v445
    %1753 = vmatpush1.msra.mxu0 %v444
    %1754 = vmatprep.subr.mxu0 %v447
    %1755 = vmatpush1.msra.mxu0 %v446
    %1756 = vmatprep.subr.mxu0 %v449
    %1757 = vmatpush1.msra.mxu0 %v448
    %1758 = vmatprep.subr.mxu0 %v451
    %1759 = vmatpush1.msra.mxu0 %v450
    %1760 = vmatprep.subr.mxu0 %v453
    %1761 = vmatpush1.msra.mxu0 %v452
    %1762 = vmatprep.subr.mxu0 %v455
    %1763 = vmatpush1.msra.mxu0 %v454
    %1764 = vmatprep.subr.mxu0 %v457
    %1765 = vmatpush1.msra.mxu0 %v456
    %1766 = vmatprep.subr.mxu0 %v459
    %1767 = vmatpush1.msra.mxu0 %v458
    %1768 = vmatprep.subr.mxu0 %v461
    %1769 = vmatpush1.msra.mxu0 %v460
    %1770 = vmatprep.subr.mxu0 %v463
    %1771 = vmatpush1.msra.mxu0 %v462
    %1772 = vmatprep.subr.mxu0 %v465
    %1773 = vmatpush1.msra.mxu0 %v464
    %1774 = vmatprep.subr.mxu0 %v467
    %1775 = vmatpush1.msra.mxu0 %v466
    %1776 = vmatprep.subr.mxu0 %v469
    %1777 = vmatpush1.msra.mxu0 %v468
    %1778 = vmatprep.subr.mxu0 %v471
    %1779 = vmatpush1.msra.mxu0 %v470
    %1780 = vmatprep.mubr.f32.mxu0 %v1153
    %1781 = vmatmul.mubr.f32.gmra.mrb[0].mxu0 %v1139
    %v1782 = vpop.f32.mrb[0].mxu0
    %v1783 = vadd.f32 %v1712, %v1782
    %v1784 = vpop.f32.mrb[0].mxu0
    %v1785 = vadd.f32 %v1714, %v1784
    %1786 = vdwg.mxu0
    %1787 = vmatprep.subr.mxu0 %v473
    %1788 = vmatpush1.msra.mxu0 %v472
    %1789 = vmatprep.subr.mxu0 %v475
    %1790 = vmatpush1.msra.mxu0 %v474
    %1791 = vmatprep.subr.mxu0 %v477
    %1792 = vmatpush1.msra.mxu0 %v476
    %1793 = vmatprep.subr.mxu0 %v479
    %1794 = vmatpush1.msra.mxu0 %v478
    %1795 = vmatprep.subr.mxu0 %v481
    %1796 = vmatpush1.msra.mxu0 %v480
    %1797 = vmatprep.subr.mxu0 %v483
    %1798 = vmatpush1.msra.mxu0 %v482
    %1799 = vmatprep.subr.mxu0 %v485
    %1800 = vmatpush1.msra.mxu0 %v484
    %1801 = vmatprep.subr.mxu0 %v487
    %1802 = vmatpush1.msra.mxu0 %v486
    %1803 = vmatprep.subr.mxu0 %v489
    %1804 = vmatpush1.msra.mxu0 %v488
    %1805 = vmatprep.subr.mxu0 %v491
    %1806 = vmatpush1.msra.mxu0 %v490
    %1807 = vmatprep.subr.mxu0 %v493
    %1808 = vmatpush1.msra.mxu0 %v492
    %1809 = vmatprep.subr.mxu0 %v495
    %1810 = vmatpush1.msra.mxu0 %v494
    %1811 = vmatprep.subr.mxu0 %v497
    %1812 = vmatpush1.msra.mxu0 %v496
    %1813 = vmatprep.subr.mxu0 %v499
    %1814 = vmatpush1.msra.mxu0 %v498
    %1815 = vmatprep.subr.mxu0 %v501
    %1816 = vmatpush1.msra.mxu0 %v500
    %1817 = vmatprep.subr.mxu0 %v503
    %1818 = vmatpush1.msra.mxu0 %v502
    %1819 = vmatprep.subr.mxu0 %v505
    %1820 = vmatpush1.msra.mxu0 %v504
    %1821 = vmatprep.subr.mxu0 %v507
    %1822 = vmatpush1.msra.mxu0 %v506
    %1823 = vmatprep.subr.mxu0 %v509
    %1824 = vmatpush1.msra.mxu0 %v508
    %1825 = vmatprep.subr.mxu0 %v511
    %1826 = vmatpush1.msra.mxu0 %v510
    %1827 = vmatprep.subr.mxu0 %v513
    %1828 = vmatpush1.msra.mxu0 %v512
    %1829 = vmatprep.subr.mxu0 %v515
    %1830 = vmatpush1.msra.mxu0 %v514
    %1831 = vmatprep.subr.mxu0 %v517
    %1832 = vmatpush1.msra.mxu0 %v516
    %1833 = vmatprep.subr.mxu0 %v519
    %1834 = vmatpush1.msra.mxu0 %v518
    %1835 = vmatprep.subr.mxu0 %v521
    %1836 = vmatpush1.msra.mxu0 %v520
    %1837 = vmatprep.subr.mxu0 %v523
    %1838 = vmatpush1.msra.mxu0 %v522
    %1839 = vmatprep.subr.mxu0 %v525
    %1840 = vmatpush1.msra.mxu0 %v524
    %1841 = vmatprep.subr.mxu0 %v527
    %1842 = vmatpush1.msra.mxu0 %v526
    %1843 = vmatprep.subr.mxu0 %v529
    %1844 = vmatpush1.msra.mxu0 %v528
    %1845 = vmatprep.subr.mxu0 %v531
    %1846 = vmatpush1.msra.mxu0 %v530
    %1847 = vmatprep.subr.mxu0 %v533
    %1848 = vmatpush1.msra.mxu0 %v532
    %1849 = vmatprep.subr.mxu0 %v535
    %1850 = vmatpush1.msra.mxu0 %v534
    %1851 = vmatprep.mubr.f32.mxu0 %v1157
    %1852 = vmatmul.mubr.f32.gmra.mrb[0].mxu0 %v1155
    %v1853 = vpop.f32.mrb[0].mxu0
    %v1854 = vadd.f32 %v1783, %v1853
    %v1855 = vpop.f32.mrb[0].mxu0
    %v1856 = vadd.f32 %v1785, %v1855
    %1857 = vdwg.mxu0
    %1858 = vmatprep.subr.mxu0 %v537
    %1859 = vmatpush1.msra.mxu0 %v536
    %1860 = vmatprep.subr.mxu0 %v539
    %1861 = vmatpush1.msra.mxu0 %v538
    %1862 = vmatprep.subr.mxu0 %v541
    %1863 = vmatpush1.msra.mxu0 %v540
    %1864 = vmatprep.subr.mxu0 %v543
    %1865 = vmatpush1.msra.mxu0 %v542
    %1866 = vmatprep.subr.mxu0 %v545
    %1867 = vmatpush1.msra.mxu0 %v544
    %1868 = vmatprep.subr.mxu0 %v547
    %1869 = vmatpush1.msra.mxu0 %v546
    %1870 = vmatprep.subr.mxu0 %v549
    %1871 = vmatpush1.msra.mxu0 %v548
    %1872 = vmatprep.subr.mxu0 %v551
    %1873 = vmatpush1.msra.mxu0 %v550
    %1874 = vmatprep.subr.mxu0 %v553
    %1875 = vmatpush1.msra.mxu0 %v552
    %1876 = vmatprep.subr.mxu0 %v555
    %1877 = vmatpush1.msra.mxu0 %v554
    %1878 = vmatprep.subr.mxu0 %v557
    %1879 = vmatpush1.msra.mxu0 %v556
    %1880 = vmatprep.subr.mxu0 %v559
    %1881 = vmatpush1.msra.mxu0 %v558
    %1882 = vmatprep.subr.mxu0 %v561
    %1883 = vmatpush1.msra.mxu0 %v560
    %1884 = vmatprep.subr.mxu0 %v563
    %1885 = vmatpush1.msra.mxu0 %v562
    %1886 = vmatprep.subr.mxu0 %v565
    %1887 = vmatpush1.msra.mxu0 %v564
    %1888 = vmatprep.subr.mxu0 %v567
    %1889 = vmatpush1.msra.mxu0 %v566
    %1890 = vmatprep.subr.mxu0 %v569
    %1891 = vmatpush1.msra.mxu0 %v568
    %1892 = vmatprep.subr.mxu0 %v571
    %1893 = vmatpush1.msra.mxu0 %v570
    %1894 = vmatprep.subr.mxu0 %v573
    %1895 = vmatpush1.msra.mxu0 %v572
    %1896 = vmatprep.subr.mxu0 %v575
    %1897 = vmatpush1.msra.mxu0 %v574
    %1898 = vmatprep.subr.mxu0 %v577
    %1899 = vmatpush1.msra.mxu0 %v576
    %1900 = vmatprep.subr.mxu0 %v579
    %1901 = vmatpush1.msra.mxu0 %v578
    %1902 = vmatprep.subr.mxu0 %v581
    %1903 = vmatpush1.msra.mxu0 %v580
    %1904 = vmatprep.subr.mxu0 %v583
    %1905 = vmatpush1.msra.mxu0 %v582
    %1906 = vmatprep.subr.mxu0 %v585
    %1907 = vmatpush1.msra.mxu0 %v584
    %1908 = vmatprep.subr.mxu0 %v587
    %1909 = vmatpush1.msra.mxu0 %v586
    %1910 = vmatprep.subr.mxu0 %v589
    %1911 = vmatpush1.msra.mxu0 %v588
    %1912 = vmatprep.subr.mxu0 %v591
    %1913 = vmatpush1.msra.mxu0 %v590
    %1914 = vmatprep.subr.mxu0 %v593
    %1915 = vmatpush1.msra.mxu0 %v592
    %1916 = vmatprep.subr.mxu0 %v595
    %1917 = vmatpush1.msra.mxu0 %v594
    %1918 = vmatprep.subr.mxu0 %v597
    %1919 = vmatpush1.msra.mxu0 %v596
    %1920 = vmatprep.subr.mxu0 %v599
    %1921 = vmatpush1.msra.mxu0 %v598
    %1922 = vmatprep.mubr.f32.mxu0 %v1196
    %1923 = vmatmul.mubr.f32.gmra.mrb[0].mxu0 %v1182
    %v1924 = vpop.f32.mrb[0].mxu0
    %v1925 = vadd.f32 %v1854, %v1924
    %v1926 = vpop.f32.mrb[0].mxu0
    %v1927 = vadd.f32 %v1856, %v1926
    %1928 = vdwg.mxu0
    %1929 = vmatprep.subr.mxu0 %v601
    %1930 = vmatpush1.msra.mxu0 %v600
    %1931 = vmatprep.subr.mxu0 %v603
    %1932 = vmatpush1.msra.mxu0 %v602
    %1933 = vmatprep.subr.mxu0 %v605
    %1934 = vmatpush1.msra.mxu0 %v604
    %1935 = vmatprep.subr.mxu0 %v607
    %1936 = vmatpush1.msra.mxu0 %v606
    %1937 = vmatprep.subr.mxu0 %v609
    %1938 = vmatpush1.msra.mxu0 %v608
    %1939 = vmatprep.subr.mxu0 %v611
    %1940 = vmatpush1.msra.mxu0 %v610
    %1941 = vmatprep.subr.mxu0 %v613
    %1942 = vmatpush1.msra.mxu0 %v612
    %1943 = vmatprep.subr.mxu0 %v615
    %1944 = vmatpush1.msra.mxu0 %v614
    %1945 = vmatprep.subr.mxu0 %v617
    %1946 = vmatpush1.msra.mxu0 %v616
    %1947 = vmatprep.subr.mxu0 %v619
    %1948 = vmatpush1.msra.mxu0 %v618
    %1949 = vmatprep.subr.mxu0 %v621
    %1950 = vmatpush1.msra.mxu0 %v620
    %1951 = vmatprep.subr.mxu0 %v623
    %1952 = vmatpush1.msra.mxu0 %v622
    %1953 = vmatprep.subr.mxu0 %v625
    %1954 = vmatpush1.msra.mxu0 %v624
    %1955 = vmatprep.subr.mxu0 %v627
    %1956 = vmatpush1.msra.mxu0 %v626
    %1957 = vmatprep.subr.mxu0 %v629
    %1958 = vmatpush1.msra.mxu0 %v628
    %1959 = vmatprep.subr.mxu0 %v631
    %1960 = vmatpush1.msra.mxu0 %v630
    %1961 = vmatprep.subr.mxu0 %v633
    %1962 = vmatpush1.msra.mxu0 %v632
    %1963 = vmatprep.subr.mxu0 %v635
    %1964 = vmatpush1.msra.mxu0 %v634
    %1965 = vmatprep.subr.mxu0 %v637
    %1966 = vmatpush1.msra.mxu0 %v636
    %1967 = vmatprep.subr.mxu0 %v639
    %1968 = vmatpush1.msra.mxu0 %v638
    %1969 = vmatprep.subr.mxu0 %v641
    %1970 = vmatpush1.msra.mxu0 %v640
    %1971 = vmatprep.subr.mxu0 %v643
    %1972 = vmatpush1.msra.mxu0 %v642
    %1973 = vmatprep.subr.mxu0 %v645
    %1974 = vmatpush1.msra.mxu0 %v644
    %1975 = vmatprep.subr.mxu0 %v647
    %1976 = vmatpush1.msra.mxu0 %v646
    %1977 = vmatprep.subr.mxu0 %v649
    %1978 = vmatpush1.msra.mxu0 %v648
    %1979 = vmatprep.subr.mxu0 %v651
    %1980 = vmatpush1.msra.mxu0 %v650
    %1981 = vmatprep.subr.mxu0 %v653
    %1982 = vmatpush1.msra.mxu0 %v652
    %1983 = vmatprep.subr.mxu0 %v655
    %1984 = vmatpush1.msra.mxu0 %v654
    %1985 = vmatprep.subr.mxu0 %v657
    %1986 = vmatpush1.msra.mxu0 %v656
    %1987 = vmatprep.subr.mxu0 %v659
    %1988 = vmatpush1.msra.mxu0 %v658
    %1989 = vmatprep.subr.mxu0 %v661
    %1990 = vmatpush1.msra.mxu0 %v660
    %1991 = vmatprep.subr.mxu0 %v663
    %1992 = vmatpush1.msra.mxu0 %v662
    %1993 = vmatprep.mubr.f32.mxu0 %v1206
    %1994 = vmatmul.mubr.f32.gmra.mrb[0].mxu0 %v1204
    %v1995 = vpop.f32.mrb[0].mxu0
    %v1996 = vadd.f32 %v1925, %v1995
    %v1997 = vpop.f32.mrb[0].mxu0
    %v1998 = vadd.f32 %v1927, %v1997
    %1999 = vdwg.mxu0
    %2000 = vmatprep.subr.mxu0 %v665
    %2001 = vmatpush1.msra.mxu0 %v664
    %2002 = vmatprep.subr.mxu0 %v667
    %2003 = vmatpush1.msra.mxu0 %v666
    %2004 = vmatprep.subr.mxu0 %v669
    %2005 = vmatpush1.msra.mxu0 %v668
    %2006 = vmatprep.subr.mxu0 %v671
    %2007 = vmatpush1.msra.mxu0 %v670
    %2008 = vmatprep.subr.mxu0 %v673
    %2009 = vmatpush1.msra.mxu0 %v672
    %2010 = vmatprep.subr.mxu0 %v675
    %2011 = vmatpush1.msra.mxu0 %v674
    %2012 = vmatprep.subr.mxu0 %v677
    %2013 = vmatpush1.msra.mxu0 %v676
    %2014 = vmatprep.subr.mxu0 %v679
    %2015 = vmatpush1.msra.mxu0 %v678
    %2016 = vmatprep.subr.mxu0 %v681
    %2017 = vmatpush1.msra.mxu0 %v680
    %2018 = vmatprep.subr.mxu0 %v683
    %2019 = vmatpush1.msra.mxu0 %v682
    %2020 = vmatprep.subr.mxu0 %v685
    %2021 = vmatpush1.msra.mxu0 %v684
    %2022 = vmatprep.subr.mxu0 %v687
    %2023 = vmatpush1.msra.mxu0 %v686
    %2024 = vmatprep.subr.mxu0 %v689
    %2025 = vmatpush1.msra.mxu0 %v688
    %2026 = vmatprep.subr.mxu0 %v691
    %2027 = vmatpush1.msra.mxu0 %v690
    %2028 = vmatprep.subr.mxu0 %v693
    %2029 = vmatpush1.msra.mxu0 %v692
    %2030 = vmatprep.subr.mxu0 %v695
    %2031 = vmatpush1.msra.mxu0 %v694
    %2032 = vmatprep.subr.mxu0 %v697
    %2033 = vmatpush1.msra.mxu0 %v696
    %2034 = vmatprep.subr.mxu0 %v699
    %2035 = vmatpush1.msra.mxu0 %v698
    %2036 = vmatprep.subr.mxu0 %v701
    %2037 = vmatpush1.msra.mxu0 %v700
    %2038 = vmatprep.subr.mxu0 %v703
    %2039 = vmatpush1.msra.mxu0 %v702
    %2040 = vmatprep.subr.mxu0 %v705
    %2041 = vmatpush1.msra.mxu0 %v704
    %2042 = vmatprep.subr.mxu0 %v707
    %2043 = vmatpush1.msra.mxu0 %v706
    %2044 = vmatprep.subr.mxu0 %v709
    %2045 = vmatpush1.msra.mxu0 %v708
    %2046 = vmatprep.subr.mxu0 %v711
    %2047 = vmatpush1.msra.mxu0 %v710
    %2048 = vmatprep.subr.mxu0 %v713
    %2049 = vmatpush1.msra.mxu0 %v712
    %2050 = vmatprep.subr.mxu0 %v715
    %2051 = vmatpush1.msra.mxu0 %v714
    %2052 = vmatprep.subr.mxu0 %v717
    %2053 = vmatpush1.msra.mxu0 %v716
    %2054 = vmatprep.subr.mxu0 %v719
    %2055 = vmatpush1.msra.mxu0 %v718
    %2056 = vmatprep.subr.mxu0 %v721
    %2057 = vmatpush1.msra.mxu0 %v720
    %2058 = vmatprep.subr.mxu0 %v723
    %2059 = vmatpush1.msra.mxu0 %v722
    %2060 = vmatprep.subr.mxu0 %v725
    %2061 = vmatpush1.msra.mxu0 %v724
    %2062 = vmatprep.subr.mxu0 %v727
    %2063 = vmatpush1.msra.mxu0 %v726
    %2064 = vmatprep.mubr.f32.mxu0 %v1203
    %2065 = vmatmul.mubr.f32.gmra.mrb[0].mxu0 %v1189
    %v2066 = vpop.f32.mrb[0].mxu0
    %v2067 = vadd.f32 %v1996, %v2066
    %v2068 = vpop.f32.mrb[0].mxu0
    %v2069 = vadd.f32 %v1998, %v2068
    %2070 = vdwg.mxu0
    %2071 = vmatprep.subr.mxu0 %v729
    %2072 = vmatpush1.msra.mxu0 %v728
    %2073 = vmatprep.subr.mxu0 %v731
    %2074 = vmatpush1.msra.mxu0 %v730
    %2075 = vmatprep.subr.mxu0 %v733
    %2076 = vmatpush1.msra.mxu0 %v732
    %2077 = vmatprep.subr.mxu0 %v735
    %2078 = vmatpush1.msra.mxu0 %v734
    %2079 = vmatprep.subr.mxu0 %v737
    %2080 = vmatpush1.msra.mxu0 %v736
    %2081 = vmatprep.subr.mxu0 %v739
    %2082 = vmatpush1.msra.mxu0 %v738
    %2083 = vmatprep.subr.mxu0 %v741
    %2084 = vmatpush1.msra.mxu0 %v740
    %2085 = vmatprep.subr.mxu0 %v743
    %2086 = vmatpush1.msra.mxu0 %v742
    %2087 = vmatprep.subr.mxu0 %v745
    %2088 = vmatpush1.msra.mxu0 %v744
    %2089 = vmatprep.subr.mxu0 %v747
    %2090 = vmatpush1.msra.mxu0 %v746
    %2091 = vmatprep.subr.mxu0 %v749
    %2092 = vmatpush1.msra.mxu0 %v748
    %2093 = vmatprep.subr.mxu0 %v751
    %2094 = vmatpush1.msra.mxu0 %v750
    %2095 = vmatprep.subr.mxu0 %v753
    %2096 = vmatpush1.msra.mxu0 %v752
    %2097 = vmatprep.subr.mxu0 %v755
    %2098 = vmatpush1.msra.mxu0 %v754
    %2099 = vmatprep.subr.mxu0 %v757
    %2100 = vmatpush1.msra.mxu0 %v756
    %2101 = vmatprep.subr.mxu0 %v759
    %2102 = vmatpush1.msra.mxu0 %v758
    %2103 = vmatprep.subr.mxu0 %v761
    %2104 = vmatpush1.msra.mxu0 %v760
    %2105 = vmatprep.subr.mxu0 %v763
    %2106 = vmatpush1.msra.mxu0 %v762
    %2107 = vmatprep.subr.mxu0 %v765
    %2108 = vmatpush1.msra.mxu0 %v764
    %2109 = vmatprep.subr.mxu0 %v767
    %2110 = vmatpush1.msra.mxu0 %v766
    %2111 = vmatprep.subr.mxu0 %v769
    %2112 = vmatpush1.msra.mxu0 %v768
    %2113 = vmatprep.subr.mxu0 %v771
    %2114 = vmatpush1.msra.mxu0 %v770
    %2115 = vmatprep.subr.mxu0 %v773
    %2116 = vmatpush1.msra.mxu0 %v772
    %2117 = vmatprep.subr.mxu0 %v775
    %2118 = vmatpush1.msra.mxu0 %v774
    %2119 = vmatprep.subr.mxu0 %v777
    %2120 = vmatpush1.msra.mxu0 %v776
    %2121 = vmatprep.subr.mxu0 %v779
    %2122 = vmatpush1.msra.mxu0 %v778
    %2123 = vmatprep.subr.mxu0 %v781
    %2124 = vmatpush1.msra.mxu0 %v780
    %2125 = vmatprep.subr.mxu0 %v783
    %2126 = vmatpush1.msra.mxu0 %v782
    %2127 = vmatprep.subr.mxu0 %v785
    %2128 = vmatpush1.msra.mxu0 %v784
    %2129 = vmatprep.subr.mxu0 %v787
    %2130 = vmatpush1.msra.mxu0 %v786
    %2131 = vmatprep.subr.mxu0 %v789
    %2132 = vmatpush1.msra.mxu0 %v788
    %2133 = vmatprep.subr.mxu0 %v791
    %2134 = vmatpush1.msra.mxu0 %v790
    %2135 = vmatprep.mubr.f32.mxu0 %v1207
    %2136 = vmatmul.mubr.f32.gmra.mrb[0].mxu0 %v1205
    %v2137 = vpop.f32.mrb[0].mxu0
    %v2138 = vadd.f32 %v2067, %v2137
    %v2139 = vpop.f32.mrb[0].mxu0
    %v2140 = vadd.f32 %v2069, %v2139
    %2141 = vdwg.mxu0
    %2142 = vmatprep.subr.mxu0 %v793
    %2143 = vmatpush1.msra.mxu0 %v792
    %2144 = vmatprep.subr.mxu0 %v795
    %2145 = vmatpush1.msra.mxu0 %v794
    %2146 = vmatprep.subr.mxu0 %v797
    %2147 = vmatpush1.msra.mxu0 %v796
    %2148 = vmatprep.subr.mxu0 %v799
    %2149 = vmatpush1.msra.mxu0 %v798
    %2150 = vmatprep.subr.mxu0 %v801
    %2151 = vmatpush1.msra.mxu0 %v800
    %2152 = vmatprep.subr.mxu0 %v803
    %2153 = vmatpush1.msra.mxu0 %v802
    %2154 = vmatprep.subr.mxu0 %v805
    %2155 = vmatpush1.msra.mxu0 %v804
    %2156 = vmatprep.subr.mxu0 %v807
    %2157 = vmatpush1.msra.mxu0 %v806
    %2158 = vmatprep.subr.mxu0 %v809
    %2159 = vmatpush1.msra.mxu0 %v808
    %2160 = vmatprep.subr.mxu0 %v811
    %2161 = vmatpush1.msra.mxu0 %v810
    %2162 = vmatprep.subr.mxu0 %v813
    %2163 = vmatpush1.msra.mxu0 %v812
    %2164 = vmatprep.subr.mxu0 %v815
    %2165 = vmatpush1.msra.mxu0 %v814
    %2166 = vmatprep.subr.mxu0 %v817
    %2167 = vmatpush1.msra.mxu0 %v816
    %2168 = vmatprep.subr.mxu0 %v819
    %2169 = vmatpush1.msra.mxu0 %v818
    %2170 = vmatprep.subr.mxu0 %v821
    %2171 = vmatpush1.msra.mxu0 %v820
    %2172 = vmatprep.subr.mxu0 %v823
    %2173 = vmatpush1.msra.mxu0 %v822
    %2174 = vmatprep.subr.mxu0 %v825
    %2175 = vmatpush1.msra.mxu0 %v824
    %2176 = vmatprep.subr.mxu0 %v827
    %2177 = vmatpush1.msra.mxu0 %v826
    %2178 = vmatprep.subr.mxu0 %v829
    %2179 = vmatpush1.msra.mxu0 %v828
    %2180 = vmatprep.subr.mxu0 %v831
    %2181 = vmatpush1.msra.mxu0 %v830
    %2182 = vmatprep.subr.mxu0 %v833
    %2183 = vmatpush1.msra.mxu0 %v832
    %2184 = vmatprep.subr.mxu0 %v835
    %2185 = vmatpush1.msra.mxu0 %v834
    %2186 = vmatprep.subr.mxu0 %v837
    %2187 = vmatpush1.msra.mxu0 %v836
    %2188 = vmatprep.subr.mxu0 %v839
    %2189 = vmatpush1.msra.mxu0 %v838
    %2190 = vmatprep.subr.mxu0 %v841
    %2191 = vmatpush1.msra.mxu0 %v840
    %2192 = vmatprep.subr.mxu0 %v843
    %2193 = vmatpush1.msra.mxu0 %v842
    %2194 = vmatprep.subr.mxu0 %v845
    %2195 = vmatpush1.msra.mxu0 %v844
    %2196 = vmatprep.subr.mxu0 %v847
    %2197 = vmatpush1.msra.mxu0 %v846
    %2198 = vmatprep.subr.mxu0 %v849
    %2199 = vmatpush1.msra.mxu0 %v848
    %2200 = vmatprep.subr.mxu0 %v851
    %2201 = vmatpush1.msra.mxu0 %v850
    %2202 = vmatprep.subr.mxu0 %v853
    %2203 = vmatpush1.msra.mxu0 %v852
    %2204 = vmatprep.subr.mxu0 %v855
    %2205 = vmatpush1.msra.mxu0 %v854
    %2206 = vmatprep.mubr.f32.mxu0 %v1246
    %2207 = vmatmul.mubr.f32.gmra.mrb[0].mxu0 %v1232
    %v2208 = vpop.f32.mrb[0].mxu0
    %v2209 = vadd.f32 %v2138, %v2208
    %v2210 = vpop.f32.mrb[0].mxu0
    %v2211 = vadd.f32 %v2140, %v2210
    %2212 = vdwg.mxu0
    %2213 = vmatprep.subr.mxu0 %v857
    %2214 = vmatpush1.msra.mxu0 %v856
    %2215 = vmatprep.subr.mxu0 %v859
    %2216 = vmatpush1.msra.mxu0 %v858
    %2217 = vmatprep.subr.mxu0 %v861
    %2218 = vmatpush1.msra.mxu0 %v860
    %2219 = vmatprep.subr.mxu0 %v863
    %2220 = vmatpush1.msra.mxu0 %v862
    %2221 = vmatprep.subr.mxu0 %v865
    %2222 = vmatpush1.msra.mxu0 %v864
    %2223 = vmatprep.subr.mxu0 %v867
    %2224 = vmatpush1.msra.mxu0 %v866
    %2225 = vmatprep.subr.mxu0 %v869
    %2226 = vmatpush1.msra.mxu0 %v868
    %2227 = vmatprep.subr.mxu0 %v871
    %2228 = vmatpush1.msra.mxu0 %v870
    %2229 = vmatprep.subr.mxu0 %v873
    %2230 = vmatpush1.msra.mxu0 %v872
    %2231 = vmatprep.subr.mxu0 %v875
    %2232 = vmatpush1.msra.mxu0 %v874
    %2233 = vmatprep.subr.mxu0 %v877
    %2234 = vmatpush1.msra.mxu0 %v876
    %2235 = vmatprep.subr.mxu0 %v879
    %2236 = vmatpush1.msra.mxu0 %v878
    %2237 = vmatprep.subr.mxu0 %v881
    %2238 = vmatpush1.msra.mxu0 %v880
    %2239 = vmatprep.subr.mxu0 %v883
    %2240 = vmatpush1.msra.mxu0 %v882
    %2241 = vmatprep.subr.mxu0 %v885
    %2242 = vmatpush1.msra.mxu0 %v884
    %2243 = vmatprep.subr.mxu0 %v887
    %2244 = vmatpush1.msra.mxu0 %v886
    %2245 = vmatprep.subr.mxu0 %v889
    %2246 = vmatpush1.msra.mxu0 %v888
    %2247 = vmatprep.subr.mxu0 %v891
    %2248 = vmatpush1.msra.mxu0 %v890
    %2249 = vmatprep.subr.mxu0 %v893
    %2250 = vmatpush1.msra.mxu0 %v892
    %2251 = vmatprep.subr.mxu0 %v895
    %2252 = vmatpush1.msra.mxu0 %v894
    %2253 = vmatprep.subr.mxu0 %v897
    %2254 = vmatpush1.msra.mxu0 %v896
    %2255 = vmatprep.subr.mxu0 %v899
    %2256 = vmatpush1.msra.mxu0 %v898
    %2257 = vmatprep.subr.mxu0 %v901
    %2258 = vmatpush1.msra.mxu0 %v900
    %2259 = vmatprep.subr.mxu0 %v903
    %2260 = vmatpush1.msra.mxu0 %v902
    %2261 = vmatprep.subr.mxu0 %v905
    %2262 = vmatpush1.msra.mxu0 %v904
    %2263 = vmatprep.subr.mxu0 %v907
    %2264 = vmatpush1.msra.mxu0 %v906
    %2265 = vmatprep.subr.mxu0 %v909
    %2266 = vmatpush1.msra.mxu0 %v908
    %2267 = vmatprep.subr.mxu0 %v911
    %2268 = vmatpush1.msra.mxu0 %v910
    %2269 = vmatprep.subr.mxu0 %v913
    %2270 = vmatpush1.msra.mxu0 %v912
    %2271 = vmatprep.subr.mxu0 %v915
    %2272 = vmatpush1.msra.mxu0 %v914
    %2273 = vmatprep.subr.mxu0 %v917
    %2274 = vmatpush1.msra.mxu0 %v916
    %2275 = vmatprep.subr.mxu0 %v919
    %2276 = vmatpush1.msra.mxu0 %v918
    %2277 = vmatprep.mubr.f32.mxu0 %v1256
    %2278 = vmatmul.mubr.f32.gmra.mrb[0].mxu0 %v1254
    %v2279 = vpop.f32.mrb[0].mxu0
    %v2280 = vadd.f32 %v2209, %v2279
    %v2281 = vpop.f32.mrb[0].mxu0
    %v2282 = vadd.f32 %v2211, %v2281
    %2283 = vdwg.mxu0
    %2284 = vmatprep.subr.mxu0 %v921
    %2285 = vmatpush1.msra.mxu0 %v920
    %2286 = vmatprep.subr.mxu0 %v923
    %2287 = vmatpush1.msra.mxu0 %v922
    %2288 = vmatprep.subr.mxu0 %v925
    %2289 = vmatpush1.msra.mxu0 %v924
    %2290 = vmatprep.subr.mxu0 %v927
    %2291 = vmatpush1.msra.mxu0 %v926
    %2292 = vmatprep.subr.mxu0 %v929
    %2293 = vmatpush1.msra.mxu0 %v928
    %2294 = vmatprep.subr.mxu0 %v931
    %2295 = vmatpush1.msra.mxu0 %v930
    %2296 = vmatprep.subr.mxu0 %v933
    %2297 = vmatpush1.msra.mxu0 %v932
    %2298 = vmatprep.subr.mxu0 %v935
    %2299 = vmatpush1.msra.mxu0 %v934
    %2300 = vmatprep.subr.mxu0 %v937
    %2301 = vmatpush1.msra.mxu0 %v936
    %2302 = vmatprep.subr.mxu0 %v939
    %2303 = vmatpush1.msra.mxu0 %v938
    %2304 = vmatprep.subr.mxu0 %v941
    %2305 = vmatpush1.msra.mxu0 %v940
    %2306 = vmatprep.subr.mxu0 %v943
    %2307 = vmatpush1.msra.mxu0 %v942
    %2308 = vmatprep.subr.mxu0 %v945
    %2309 = vmatpush1.msra.mxu0 %v944
    %2310 = vmatprep.subr.mxu0 %v947
    %2311 = vmatpush1.msra.mxu0 %v946
    %2312 = vmatprep.subr.mxu0 %v949
    %2313 = vmatpush1.msra.mxu0 %v948
    %2314 = vmatprep.subr.mxu0 %v951
    %2315 = vmatpush1.msra.mxu0 %v950
    %2316 = vmatprep.subr.mxu0 %v953
    %2317 = vmatpush1.msra.mxu0 %v952
    %2318 = vmatprep.subr.mxu0 %v955
    %2319 = vmatpush1.msra.mxu0 %v954
    %2320 = vmatprep.subr.mxu0 %v957
    %2321 = vmatpush1.msra.mxu0 %v956
    %2322 = vmatprep.subr.mxu0 %v959
    %2323 = vmatpush1.msra.mxu0 %v958
    %2324 = vmatprep.subr.mxu0 %v961
    %2325 = vmatpush1.msra.mxu0 %v960
    %2326 = vmatprep.subr.mxu0 %v963
    %2327 = vmatpush1.msra.mxu0 %v962
    %2328 = vmatprep.subr.mxu0 %v965
    %2329 = vmatpush1.msra.mxu0 %v964
    %2330 = vmatprep.subr.mxu0 %v967
    %2331 = vmatpush1.msra.mxu0 %v966
    %2332 = vmatprep.subr.mxu0 %v969
    %2333 = vmatpush1.msra.mxu0 %v968
    %2334 = vmatprep.subr.mxu0 %v971
    %2335 = vmatpush1.msra.mxu0 %v970
    %2336 = vmatprep.subr.mxu0 %v973
    %2337 = vmatpush1.msra.mxu0 %v972
    %2338 = vmatprep.subr.mxu0 %v975
    %2339 = vmatpush1.msra.mxu0 %v974
    %2340 = vmatprep.subr.mxu0 %v977
    %2341 = vmatpush1.msra.mxu0 %v976
    %2342 = vmatprep.subr.mxu0 %v979
    %2343 = vmatpush1.msra.mxu0 %v978
    %2344 = vmatprep.subr.mxu0 %v981
    %2345 = vmatpush1.msra.mxu0 %v980
    %2346 = vmatprep.subr.mxu0 %v983
    %2347 = vmatpush1.msra.mxu0 %v982
    %2348 = vmatprep.mubr.f32.mxu0 %v1253
    %2349 = vmatmul.mubr.f32.gmra.mrb[0].mxu0 %v1239
    %v2350 = vpop.f32.mrb[0].mxu0
    %v2351 = vadd.f32 %v2280, %v2350
    %v2352 = vpop.f32.mrb[0].mxu0
    %v2353 = vadd.f32 %v2282, %v2352
    %2354 = vdwg.mxu0
    %2355 = vmatprep.subr.mxu0 %v985
    %2356 = vmatpush1.msra.mxu0 %v984
    %2357 = vmatprep.subr.mxu0 %v987
    %2358 = vmatpush1.msra.mxu0 %v986
    %2359 = vmatprep.subr.mxu0 %v989
    %2360 = vmatpush1.msra.mxu0 %v988
    %2361 = vmatprep.subr.mxu0 %v991
    %2362 = vmatpush1.msra.mxu0 %v990
    %2363 = vmatprep.subr.mxu0 %v993
    %2364 = vmatpush1.msra.mxu0 %v992
    %2365 = vmatprep.subr.mxu0 %v995
    %2366 = vmatpush1.msra.mxu0 %v994
    %2367 = vmatprep.subr.mxu0 %v997
    %2368 = vmatpush1.msra.mxu0 %v996
    %2369 = vmatprep.subr.mxu0 %v999
    %2370 = vmatpush1.msra.mxu0 %v998
    %2371 = vmatprep.subr.mxu0 %v1001
    %2372 = vmatpush1.msra.mxu0 %v1000
    %2373 = vmatprep.subr.mxu0 %v1003
    %2374 = vmatpush1.msra.mxu0 %v1002
    %2375 = vmatprep.subr.mxu0 %v1005
    %2376 = vmatpush1.msra.mxu0 %v1004
    %2377 = vmatprep.subr.mxu0 %v1007
    %2378 = vmatpush1.msra.mxu0 %v1006
    %2379 = vmatprep.subr.mxu0 %v1009
    %2380 = vmatpush1.msra.mxu0 %v1008
    %2381 = vmatprep.subr.mxu0 %v1011
    %2382 = vmatpush1.msra.mxu0 %v1010
    %2383 = vmatprep.subr.mxu0 %v1013
    %2384 = vmatpush1.msra.mxu0 %v1012
    %2385 = vmatprep.subr.mxu0 %v1015
    %2386 = vmatpush1.msra.mxu0 %v1014
    %2387 = vmatprep.subr.mxu0 %v1017
    %2388 = vmatpush1.msra.mxu0 %v1016
    %2389 = vmatprep.subr.mxu0 %v1019
    %2390 = vmatpush1.msra.mxu0 %v1018
    %2391 = vmatprep.subr.mxu0 %v1021
    %2392 = vmatpush1.msra.mxu0 %v1020
    %2393 = vmatprep.subr.mxu0 %v1023
    %2394 = vmatpush1.msra.mxu0 %v1022
    %2395 = vmatprep.subr.mxu0 %v1025
    %2396 = vmatpush1.msra.mxu0 %v1024
    %2397 = vmatprep.subr.mxu0 %v1027
    %2398 = vmatpush1.msra.mxu0 %v1026
    %2399 = vmatprep.subr.mxu0 %v1029
    %2400 = vmatpush1.msra.mxu0 %v1028
    %2401 = vmatprep.subr.mxu0 %v1031
    %2402 = vmatpush1.msra.mxu0 %v1030
    %2403 = vmatprep.subr.mxu0 %v1033
    %2404 = vmatpush1.msra.mxu0 %v1032
    %2405 = vmatprep.subr.mxu0 %v1035
    %2406 = vmatpush1.msra.mxu0 %v1034
    %2407 = vmatprep.subr.mxu0 %v1037
    %2408 = vmatpush1.msra.mxu0 %v1036
    %2409 = vmatprep.subr.mxu0 %v1039
    %2410 = vmatpush1.msra.mxu0 %v1038
    %2411 = vmatprep.subr.mxu0 %v1041
    %2412 = vmatpush1.msra.mxu0 %v1040
    %2413 = vmatprep.subr.mxu0 %v1043
    %2414 = vmatpush1.msra.mxu0 %v1042
    %2415 = vmatprep.subr.mxu0 %v1045
    %2416 = vmatpush1.msra.mxu0 %v1044
    %2417 = vmatprep.subr.mxu0 %v1047
    %2418 = vmatpush1.msra.mxu0 %v1046
    %2419 = vmatprep.mubr.f32.mxu0 %v1257
    %2420 = vmatmul.mubr.f32.gmra.mrb[0].mxu0 %v1255
    %v2421 = vpop.f32.mrb[0].mxu0
    %v2422 = vadd.f32 %v2351, %v2421
    %v2423 = vpop.f32.mrb[0].mxu0
    %v2424 = vadd.f32 %v2353, %v2423
    %2425 = vdwg.mxu0
    %v2428 = vcombine.low %v2422, %v2424
    %v2430 = vunpack.c.l.s4 1966171168
    %v2431 = vunpack.c.0.s8 %v2430
    %v2432 = vlaneseq
    %v2433 = vshrl.u32 %v2432, 7
    %v2434 = vsub.s32 %v2431, %v2433
    %v2435 = vrot.slane %v2428, %v2434
    %v2436 = vcombine.high %v2435, %v2435
    %v2438 = vunpack.c.l.s4 1966171168
    %v2439 = vunpack.c.0.s8 %v2438
    %v2440 = vlaneseq
    %v2441 = vshrl.u32 %v2440, 7
    %v2442 = vsub.s32 %v2439, %v2441
    %v2443 = vrot.slane %v2435, %v2442
    %v2445 = vunpack.c.l.s4 1966171168
    %v2446 = vunpack.c.0.s8 %v2445
    %v2447 = vlaneseq
    %v2448 = vshrl.u32 %v2447, 7
    %v2449 = vsub.s32 %v2446, %v2448
    %v2450 = vrot.slane %v2436, %v2449
    %v2453 = vlaneseq
    %vm2454 = vcmp.ge.s32.totalorder %v2453, 0
    %vm2455 = vcmp.lt.s32.totalorder %v2453, 136
    %vm2456 = vmand %vm2454, %vm2455
    %2457 = vst.msk [vmem:[#allocation3] sm:$0x3] %vm2456, %v2443
    %2458 = vst.msk [vmem:[#allocation3 + $0x2] sm:$0x3] %vm2456, %v2450
    // Predicated region
    $region14: #{tpu_custom_call.1} parent=1 // pred_check
      _
    $region15: #{tpu_custom_call.1} parent=1 // pred_check_branch
      %2460 = sbr.rel (0) target = $region17
    $region16: #{tpu_custom_call.1} parent=1 // pred_region
      %s2462 = ssub.s32 64, 64
      %2463 = vsyncadd [#allocation4], %s2462
      %s2464 = sshll.u32 [#allocation3], 4
      %s2465 = int_to_ptr.vmem [resolvable:$true] %s2464
      %2470 = dma.vmem_to_hbm [thread:$0]  %s2465, 64, %s3, [#allocation4], 32, 32, 2
    $region17: #{tpu_custom_call.1} parent=1 // pred_fallthru
      _
    // Predicated region
    $region18: #{tpu_custom_call.1} parent=1 // pred_check
      _
    $region19: #{tpu_custom_call.1} parent=1 // pred_check_branch
      %2472 = sbr.rel (0) target = $region21
    $region20: #{tpu_custom_call.1} parent=1 // pred_region
      %2473 = dma.done [#allocation4], 64
    $region21: #{tpu_custom_call.1} parent=1 // pred_fallthru
      _
    %2474 = vsyncpa [#allocation4], 1

</llo_original>
